<compile_context>
chip_gen: v5e
topology: v5e:2x2
jax: 0.10.0
libtpu: 0.0.40
codegen_flags: <defaults>
</compile_context>

<pallas_src>
import jax
import jax.numpy as jnp
from jax.experimental import pallas as pl
from jax.experimental.pallas import tpu as pltpu


# ----------------------------------------------------------------------------
# Kernel: one MXU matmul over the fused conv1∘conv2 weight, then the f32
# BatchNorm affine and PReLU on the f32 accumulator.
# ----------------------------------------------------------------------------
def embed_block_kernel(x_ref, w_ref, scale_ref, shift_ref, alpha_ref, out_ref):
    # x_ref:     (TILE_N, F)     f32 flattened activations (NCHW row-major)
    # w_ref:     (F, C_pad)      bf16 fused conv1∘conv2 weight (grid-invariant)
    # scale_ref: (1, C_pad)      f32 folded BN scale  (gamma / sqrt(var + eps))
    # shift_ref: (1, C_pad)      f32 folded BN shift  (beta - mean * scale)
    # alpha_ref: (1,)            f32 PReLU slope      (SMEM scalar)
    # out_ref:   (TILE_N, C_pad) bf16
    x = x_ref[...].astype(jnp.bfloat16)               # free VPU cast under the MXU
    y = jnp.dot(x, w_ref[...], preferred_element_type=jnp.float32)
    y = y * scale_ref[...] + shift_ref[...]           # BN affine in f32
    a = alpha_ref[0]
    y = jnp.where(y >= 0.0, y, a * y)                 # PReLU
    out_ref[...] = y.astype(out_ref.dtype)


def _pick_tile_n(n):
    # >=2 grid steps for moderate n so both v7x TensorCores get work; cap at
    # 512 rows (f32 x tile = 8 MiB, double-buffered) so the explicit 48 MiB
    # VMEM limit holds on every generation (v5e/v6e/v7x).
    if n < 32:
        return n                                      # single block == full batch dim
    half = pl.cdiv(n, 2)
    return min(512, ((half + 15) // 16) * 16)


def fuse_embed_block_params(w1, w2, gamma, beta, running_mean, running_var,
                            group_size=32, eps=1e-5):
    """One-time, init-time algebraic fusion. NOT part of the forward hot path."""
    C, Cg, K, _ = w1.shape
    assert Cg == group_size and C % group_size == 0
    G = C // Cg
    F = C * K * K

    # Block-diagonal grouped-conv weight: rows = flattened input features
    # (c-major, then kh, kw), cols = conv1 output channels.
    w1f = w1.reshape(G, Cg, Cg * K * K).astype(jnp.float32)   # [g, oc, ic*K*K + kh*K + kw]
    w1_bd = jnp.zeros((F, C), jnp.float32)
    for g in range(G):  # tiny static G; executed once at init
        w1_bd = w1_bd.at[g * Cg * K * K:(g + 1) * Cg * K * K,
                         g * Cg:(g + 1) * Cg].set(w1f[g].T)
    w2m = w2.reshape(C, C).astype(jnp.float32)                # (out, in)
    w_fused = w1_bd @ w2m.T                                   # (F, C), conv1∘conv2

    inv_std = 1.0 / jnp.sqrt(running_var.astype(jnp.float32) + eps)
    scale = gamma.astype(jnp.float32) * inv_std               # (C,)  kept in f32
    shift = beta.astype(jnp.float32) - running_mean.astype(jnp.float32) * scale

    # Lane-dense output padding (unmasked 128-wide stores).
    C_pad = max(128, ((C + 127) // 128) * 128)
    w_fused = jnp.pad(w_fused, ((0, 0), (0, C_pad - C))).astype(jnp.bfloat16)
    scale_p = jnp.pad(scale, (0, C_pad - C)).reshape(1, C_pad)
    shift_p = jnp.pad(shift, (0, C_pad - C)).reshape(1, C_pad)
    return w_fused, scale_p, shift_p, C, F, K, C_pad


def make_embed_block(w1, w2, gamma, beta, running_mean, running_var, alpha,
                     group_size=32, eps=1e-5):
    """Build the forward fn. All weight folding happens here, once."""
    (w_fused, scale_p, shift_p, C, F, K, C_pad) = fuse_embed_block_params(
        w1, w2, gamma, beta, running_mean, running_var, group_size, eps)
    w_fused = jax.block_until_ready(w_fused)          # materialize at init
    alpha_arr = jnp.asarray(alpha, jnp.float32).reshape(1)

    @jax.jit
    def forward(x):
        N = x.shape[0]
        assert x.shape == (N, C, K, K), x.shape       # 8x8 spatial -> 1x1 conv output
        TILE_N = _pick_tile_n(N)
        grid = (pl.cdiv(N, TILE_N),)                  # partial last block: masked stores
        xf = x.reshape(N, F)                          # pure reshape, no pad / no cast pass

        out = pl.pallas_call(
            embed_block_kernel,
            out_shape=jax.ShapeDtypeStruct((N, C_pad), jnp.bfloat16),
            grid=grid,
            in_specs=[
                pl.BlockSpec((TILE_N, F), lambda i: (i, 0)),        # x tile (streamed)
                pl.BlockSpec((F, C_pad), lambda i: (0, 0)),         # fused weight (resident)
                pl.BlockSpec((1, C_pad), lambda i: (0, 0)),         # BN scale (resident)
                pl.BlockSpec((1, C_pad), lambda i: (0, 0)),         # BN shift (resident)
                pl.BlockSpec((1,), lambda i: (0,),
                             memory_space=pltpu.MemorySpace.SMEM),  # PReLU slope
            ],
            out_specs=pl.BlockSpec((TILE_N, C_pad), lambda i: (i, 0)),
            compiler_params=pltpu.CompilerParams(
                dimension_semantics=("parallel",),
                vmem_limit_bytes=48 * 1024 * 1024),
        )(xf, w_fused, scale_p, shift_p, alpha_arr)

        return out[:, :C]                             # (N, C); batch dim already exact

    return forward


def reference(x, w1, w2, gamma, beta, rm, rv, alpha, groups, eps=1e-5):
    # Plain-JAX f32 reference using real convolutions (NCHW / OIHW), eval BN.
    y = jax.lax.conv_general_dilated(
        x, w1, (1, 1), 'VALID',
        dimension_numbers=('NCHW', 'OIHW', 'NCHW'),
        feature_group_count=groups)
    y = jax.lax.conv_general_dilated(
        y, w2, (1, 1), 'VALID',
        dimension_numbers=('NCHW', 'OIHW', 'NCHW'))
    s = gamma / jnp.sqrt(rv + eps)
    y = y * s[None, :, None, None] + (beta - rm * s)[None, :, None, None]
    y = jnp.where(y >= 0, y, alpha * y)
    return y.reshape(y.shape[0], -1)


if __name__ == "__main__":
    # Module-consistent small shapes: chan=64, group_size=32 -> groups=2,
    # 8x8 spatial so the k=8 conv collapses to 1x1 (intended EmbedBlock use).
    N, C, HW, K = 2, 64, 8, 8
    group_size = 32
    G = C // group_size
    Cg = group_size

    key = jax.random.PRNGKey(0)
    ks = jax.random.split(key, 7)
    x = jax.random.normal(ks[0], (N, C, HW, HW), jnp.float32)
    w1 = 0.05 * jax.random.normal(ks[1], (C, Cg, K, K), jnp.float32)   # grouped conv
    w2 = 0.05 * jax.random.normal(ks[2], (C, C, 1, 1), jnp.float32)    # 1x1 conv
    gamma = 1.0 + 0.1 * jax.random.normal(ks[3], (C,), jnp.float32)
    beta = 0.1 * jax.random.normal(ks[4], (C,), jnp.float32)
    running_mean = 0.1 * jax.random.normal(ks[5], (C,), jnp.float32)
    running_var = jax.random.uniform(ks[6], (C,), jnp.float32, 0.5, 1.5)
    alpha = 0.25  # nn.PReLU() default init

    # Weight fusion happens ONCE here, outside the forward hot path.
    embed_forward = make_embed_block(w1, w2, gamma, beta, running_mean,
                                     running_var, alpha, group_size=group_size)

    out = embed_forward(x)
    out = jax.block_until_ready(out)

    ref = reference(x, w1, w2, gamma, beta, running_mean, running_var, alpha, G)
    assert out.shape == (N, C), out.shape
    # bf16 activations inside the MXU + bf16 output -> relaxed tolerance vs f32 ref.
    assert jnp.allclose(out.astype(jnp.float32), ref, rtol=2e-2, atol=2e-2), \
        float(jnp.max(jnp.abs(out.astype(jnp.float32) - ref)))

    print("KERNEL_OK")
</pallas_src>

<mosaic_0001>
module attributes {stable_mosaic.version = 11 : i64} {
  func.func @embed_block_kernel(%arg0: i32, %arg1: memref<2x4096xf32, #tpu.memory_space<vmem>>, %arg2: memref<4096x128xbf16, #tpu.memory_space<vmem>>, %arg3: memref<1x128xf32, #tpu.memory_space<vmem>>, %arg4: memref<1x128xf32, #tpu.memory_space<vmem>>, %arg5: memref<1xf32, #tpu.memory_space<smem>>, %arg6: memref<2x128xbf16, #tpu.memory_space<vmem>>) attributes {dimension_semantics = [#tpu.dimension_semantics<parallel>], iteration_bounds = array<i64: 1>, scalar_prefetch = 0 : i64, scratch_operands = 0 : i64, tpu.core_type = #tpu.core_type<tc>, window_params = [{transform_indices = @transform_0, window_bounds = array<i64: 2, 4096>}, {pipeline_mode = #tpu.pipeline_mode<synchronous>, transform_indices = @transform_1, window_bounds = array<i64: 4096, 128>}, {pipeline_mode = #tpu.pipeline_mode<synchronous>, transform_indices = @transform_2, window_bounds = array<i64: 1, 128>}, {pipeline_mode = #tpu.pipeline_mode<synchronous>, transform_indices = @transform_3, window_bounds = array<i64: 1, 128>}, {transform_indices = @transform_4, window_bounds = array<i64: 1>}, {transform_indices = @transform_5, window_bounds = array<i64: 2, 128>}]} {
    %c0 = arith.constant 0 : index
    %c0_0 = arith.constant 0 : index
    %0 = vector.load %arg1[%c0, %c0_0] : memref<2x4096xf32, #tpu.memory_space<vmem>>, vector<2x4096xf32>
    %1 = arith.truncf %0 : vector<2x4096xf32> to vector<2x4096xbf16>
    %c0_1 = arith.constant 0 : index
    %c0_2 = arith.constant 0 : index
    %2 = vector.load %arg2[%c0_1, %c0_2] : memref<4096x128xbf16, #tpu.memory_space<vmem>>, vector<4096x128xbf16>
    %cst = arith.constant dense<0.000000e+00> : vector<2x128xf32>
    %3 = tpu.matmul %1, %2, %cst {dimension_numbers = #tpu.dot_dimension_numbers<[1], [0], [0], [1], [0, 0, 1, 1], [], []>} : vector<2x4096xbf16>, vector<4096x128xbf16>, vector<2x128xf32> -> vector<2x128xf32>
    %c0_3 = arith.constant 0 : index
    %c0_4 = arith.constant 0 : index
    %4 = vector.load %arg3[%c0_3, %c0_4] : memref<1x128xf32, #tpu.memory_space<vmem>>, vector<1x128xf32>
    %5 = vector.broadcast %4 : vector<1x128xf32> to vector<2x128xf32>
    %6 = arith.mulf %3, %5 : vector<2x128xf32>
    %c0_5 = arith.constant 0 : index
    %c0_6 = arith.constant 0 : index
    %7 = vector.load %arg4[%c0_5, %c0_6] : memref<1x128xf32, #tpu.memory_space<vmem>>, vector<1x128xf32>
    %8 = vector.broadcast %7 : vector<1x128xf32> to vector<2x128xf32>
    %9 = arith.addf %6, %8 : vector<2x128xf32>
    %c0_7 = arith.constant 0 : index
    %10 = memref.load %arg5[%c0_7] : memref<1xf32, #tpu.memory_space<smem>>
    %cst_8 = arith.constant 0.000000e+00 : f32
    %11 = vector.broadcast %cst_8 : f32 to vector<2x128xf32>
    %12 = arith.cmpf oge, %9, %11 : vector<2x128xf32>
    %13 = vector.broadcast %10 : f32 to vector<2x128xf32>
    %14 = arith.mulf %13, %9 : vector<2x128xf32>
    %15 = arith.select %12, %9, %14 : vector<2x128xi1>, vector<2x128xf32>
    %16 = arith.truncf %15 : vector<2x128xf32> to vector<2x128xbf16>
    %c0_9 = arith.constant 0 : index
    %c0_10 = arith.constant 0 : index
    %17 = vector.load %arg6[%c0_9, %c0_10] : memref<2x128xbf16, #tpu.memory_space<vmem>>, vector<2x128xbf16>
    tpu.vector_store %arg6[%c0_9, %c0_10], %16 {strides = array<i32>} : memref<2x128xbf16, #tpu.memory_space<vmem>>, vector<2x128xbf16>,
    return
  }
  func.func @transform_0(%arg0: i32) -> (i32, i32) {
    %c0_i32 = arith.constant 0 : i32
    %c0_i32_0 = arith.constant 0 : i32
    return %arg0, %c0_i32 : i32, i32
  }
  func.func @transform_1(%arg0: i32) -> (i32, i32) {
    %c0_i32 = arith.constant 0 : i32
    %c0_i32_0 = arith.constant 0 : i32
    %c0_i32_1 = arith.constant 0 : i32
    return %c0_i32, %c0_i32_0 : i32, i32
  }
  func.func @transform_2(%arg0: i32) -> (i32, i32) {
    %c0_i32 = arith.constant 0 : i32
    %c0_i32_0 = arith.constant 0 : i32
    %c0_i32_1 = arith.constant 0 : i32
    return %c0_i32, %c0_i32_0 : i32, i32
  }
  func.func @transform_3(%arg0: i32) -> (i32, i32) {
    %c0_i32 = arith.constant 0 : i32
    %c0_i32_0 = arith.constant 0 : i32
    %c0_i32_1 = arith.constant 0 : i32
    return %c0_i32, %c0_i32_0 : i32, i32
  }
  func.func @transform_4(%arg0: i32) -> i32 {
    %c0_i32 = arith.constant 0 : i32
    %c0_i32_0 = arith.constant 0 : i32
    return %c0_i32 : i32
  }
  func.func @transform_5(%arg0: i32) -> (i32, i32) {
    %c0_i32 = arith.constant 0 : i32
    %c0_i32_0 = arith.constant 0 : i32
    return %arg0, %c0_i32 : i32, i32
  }
}

</mosaic_0001>

<llo_original>
// kernel: forward.1
$region0: #{forward.1}
  #allocation0 [shape = 'u32[]', space=smem, size = 0x4, offset = 0x4, fixed_abs, tag = 'smem constant byte address 0x4 - core index']
  #allocation1 [shape = 'u32[72,128]{1,0:T(1,128)}', space=vmem, size = 0x9000, scoped, tag = 'internal scratch']
  #allocation2 [shape = 'f32[1]{0:T(128)S(6)}', space=smem, size = 0x200, scoped, tag = 'scoped memory for forward.1']
  %s0 = inlined_call_operand.vmem [shape: f32[2,4096], index: 0, kind: input, shape index: {}]
  %s1 = inlined_call_operand.vmem [shape: bf16[4096,128], index: 1, kind: input, shape index: {}]
  %s2 = inlined_call_operand.vmem [shape: f32[1,128], index: 2, kind: input, shape index: {}]
  %s3 = inlined_call_operand.vmem [shape: f32[1,128], index: 3, kind: input, shape index: {}]
  %s4 = inlined_call_operand.<no memory space> [shape: f32[1], index: 4, kind: input, shape index: {}]
  %s5 = inlined_call_operand.hbm [shape: bf16[2,128], index: 5, kind: output, shape index: {}]
  %s6 = sld [smem:[#allocation0]]
  $region30: #{forward.1} parent=0
    _
  %s8 = ssub.s32 1, %s6
  %s9 = scalar_select 0, %s8, %s6
  %10 = sst [smem:[#allocation2]] %s4
  $region1: #{forward.1} parent=0
    #allocation3 [shape = 'u8[512]{0}', space=vmem, size = 0x400, scoped, tag = 'output window, operand 0, single buffered']
    #allocation4 [shape = 's32[1]{0}', space=sflag, size = 0x4, scoped, tag = 'scoped memory for forward.1']
    %11 = vsyncpa [#allocation4], 0
    // Predicated region
    $region2: #{forward.1} parent=1 // pred_check
      _
    $region3: #{forward.1} parent=1 // pred_check_branch
      %13 = sbr.rel (0) target = $region5
    $region4: #{forward.1} parent=1 // pred_region
      _
    $region5: #{forward.1} parent=1 // pred_fallthru
      _
    // Predicated region
    $region6: #{forward.1} parent=1 // pred_check
      _
    $region7: #{forward.1} parent=1 // pred_check_branch
      %15 = sbr.rel (0) target = $region9
    $region8: #{forward.1} parent=1 // pred_region
      _
    $region9: #{forward.1} parent=1 // pred_fallthru
      _
    // Predicated region
    $region10: #{forward.1} parent=1 // pred_check
      _
    $region11: #{forward.1} parent=1 // pred_check_branch
      %17 = sbr.rel (0) target = $region13
    $region12: #{forward.1} parent=1 // pred_region
      _
    $region13: #{forward.1} parent=1 // pred_fallthru
      _
    // Predicated region
    $region14: #{forward.1} parent=1 // pred_check
      _
    $region15: #{forward.1} parent=1 // pred_check_branch
      %19 = sbr.rel (0) target = $region17
    $region16: #{forward.1} parent=1 // pred_region
      _
    $region17: #{forward.1} parent=1 // pred_fallthru
      _
    // Predicated region
    $region18: #{forward.1} parent=1 // pred_check
      _
    $region19: #{forward.1} parent=1 // pred_check_branch
      %21 = sbr.rel (0) target = $region21
    $region20: #{forward.1} parent=1 // pred_region
      _
    $region21: #{forward.1} parent=1 // pred_fallthru
      _
    %v22 = vld [vmem:[%s0] sm:$0xff]
    %v23 = vld [vmem:[%s0 + $0x8] sm:$0xff]
    %v24 = vld [vmem:[%s0 + $0x10] sm:$0xff]
    %v25 = vld [vmem:[%s0 + $0x18] sm:$0xff]
    %v26 = vld [vmem:[%s0 + $0x20] sm:$0xff]
    %v27 = vld [vmem:[%s0 + $0x28] sm:$0xff]
    %v28 = vld [vmem:[%s0 + $0x30] sm:$0xff]
    %v29 = vld [vmem:[%s0 + $0x38] sm:$0xff]
    %38 = vst [vmem:[#allocation1] ss:$4 sm:$0xff] %v22
    %s39 = scalar_lea.vmem [#allocation1], 32
    %40 = vst [vmem:[%s39] ss:$4 sm:$0xff] %v23
    %v41 = vld.sshfl [vmem:[#allocation1] sm:$0xff pattern:$0x73625140]
    %v42 = vld.sshfl [vmem:[#allocation1 + $0x8] sm:$0xff pattern:$0x73625140]
    %v43 = vld.sshfl [vmem:[#allocation1 + $0x10] sm:$0xff pattern:$0x73625140]
    %v44 = vld.sshfl [vmem:[#allocation1 + $0x18] sm:$0xff pattern:$0x73625140]
    %v45 = vld.sshfl [vmem:[#allocation1 + $0x20] sm:$0xff pattern:$0x73625140]
    %v46 = vld.sshfl [vmem:[#allocation1 + $0x28] sm:$0xff pattern:$0x73625140]
    %v47 = vld.sshfl [vmem:[#allocation1 + $0x30] sm:$0xff pattern:$0x73625140]
    %v48 = vld.sshfl [vmem:[#allocation1 + $0x38] sm:$0xff pattern:$0x73625140]
    %49 = vst [vmem:[#allocation1] ss:$4 sm:$0xff] %v24
    %50 = vst [vmem:[%s39] ss:$4 sm:$0xff] %v25
    %v51 = vld.sshfl [vmem:[#allocation1] sm:$0xff pattern:$0x73625140]
    %v52 = vld.sshfl [vmem:[#allocation1 + $0x8] sm:$0xff pattern:$0x73625140]
    %v53 = vld.sshfl [vmem:[#allocation1 + $0x10] sm:$0xff pattern:$0x73625140]
    %v54 = vld.sshfl [vmem:[#allocation1 + $0x18] sm:$0xff pattern:$0x73625140]
    %v55 = vld.sshfl [vmem:[#allocation1 + $0x20] sm:$0xff pattern:$0x73625140]
    %v56 = vld.sshfl [vmem:[#allocation1 + $0x28] sm:$0xff pattern:$0x73625140]
    %v57 = vld.sshfl [vmem:[#allocation1 + $0x30] sm:$0xff pattern:$0x73625140]
    %v58 = vld.sshfl [vmem:[#allocation1 + $0x38] sm:$0xff pattern:$0x73625140]
    %59 = vst [vmem:[#allocation1] ss:$4 sm:$0xff] %v26
    %60 = vst [vmem:[%s39] ss:$4 sm:$0xff] %v27
    %v61 = vld.sshfl [vmem:[#allocation1] sm:$0xff pattern:$0x73625140]
    %v62 = vld.sshfl [vmem:[#allocation1 + $0x8] sm:$0xff pattern:$0x73625140]
    %v63 = vld.sshfl [vmem:[#allocation1 + $0x10] sm:$0xff pattern:$0x73625140]
    %v64 = vld.sshfl [vmem:[#allocation1 + $0x18] sm:$0xff pattern:$0x73625140]
    %v65 = vld.sshfl [vmem:[#allocation1 + $0x20] sm:$0xff pattern:$0x73625140]
    %v66 = vld.sshfl [vmem:[#allocation1 + $0x28] sm:$0xff pattern:$0x73625140]
    %v67 = vld.sshfl [vmem:[#allocation1 + $0x30] sm:$0xff pattern:$0x73625140]
    %v68 = vld.sshfl [vmem:[#allocation1 + $0x38] sm:$0xff pattern:$0x73625140]
    %69 = vst [vmem:[#allocation1] ss:$4 sm:$0xff] %v28
    %70 = vst [vmem:[%s39] ss:$4 sm:$0xff] %v29
    %v71 = vld.sshfl [vmem:[#allocation1] sm:$0xff pattern:$0x73625140]
    %v72 = vld.sshfl [vmem:[#allocation1 + $0x8] sm:$0xff pattern:$0x73625140]
    %v73 = vld.sshfl [vmem:[#allocation1 + $0x10] sm:$0xff pattern:$0x73625140]
    %v74 = vld.sshfl [vmem:[#allocation1 + $0x18] sm:$0xff pattern:$0x73625140]
    %v75 = vld.sshfl [vmem:[#allocation1 + $0x20] sm:$0xff pattern:$0x73625140]
    %v76 = vld.sshfl [vmem:[#allocation1 + $0x28] sm:$0xff pattern:$0x73625140]
    %v77 = vld.sshfl [vmem:[#allocation1 + $0x30] sm:$0xff pattern:$0x73625140]
    %v78 = vld.sshfl [vmem:[#allocation1 + $0x38] sm:$0xff pattern:$0x73625140]
    %v111 = vpack.c.bf16 %v41, %v41
    %v112 = vpack.c.bf16 %v42, %v42
    %v113 = vpack.c.bf16 %v43, %v43
    %v114 = vpack.c.bf16 %v44, %v44
    %v115 = vpack.c.bf16 %v45, %v45
    %v116 = vpack.c.bf16 %v46, %v46
    %v117 = vpack.c.bf16 %v47, %v47
    %v118 = vpack.c.bf16 %v48, %v48
    %v119 = vpack.c.bf16 %v51, %v51
    %v120 = vpack.c.bf16 %v52, %v52
    %v121 = vpack.c.bf16 %v53, %v53
    %v122 = vpack.c.bf16 %v54, %v54
    %v123 = vpack.c.bf16 %v55, %v55
    %v124 = vpack.c.bf16 %v56, %v56
    %v125 = vpack.c.bf16 %v57, %v57
    %v126 = vpack.c.bf16 %v58, %v58
    %v127 = vpack.c.bf16 %v61, %v61
    %v128 = vpack.c.bf16 %v62, %v62
    %v129 = vpack.c.bf16 %v63, %v63
    %v130 = vpack.c.bf16 %v64, %v64
    %v131 = vpack.c.bf16 %v65, %v65
    %v132 = vpack.c.bf16 %v66, %v66
    %v133 = vpack.c.bf16 %v67, %v67
    %v134 = vpack.c.bf16 %v68, %v68
    %v135 = vpack.c.bf16 %v71, %v71
    %v136 = vpack.c.bf16 %v72, %v72
    %v137 = vpack.c.bf16 %v73, %v73
    %v138 = vpack.c.bf16 %v74, %v74
    %v139 = vpack.c.bf16 %v75, %v75
    %v140 = vpack.c.bf16 %v76, %v76
    %v141 = vpack.c.bf16 %v77, %v77
    %v142 = vpack.c.bf16 %v78, %v78
    %v143 = vld [vmem:[%s1] sm:$0xf]
    %v144 = vld [vmem:[%s1 + $0x4] sm:$0xf]
    %v145 = vld [vmem:[%s1 + $0x8] sm:$0xf]
    %v146 = vld [vmem:[%s1 + $0xc] sm:$0xf]
    %v147 = vld [vmem:[%s1 + $0x10] sm:$0xf]
    %v148 = vld [vmem:[%s1 + $0x14] sm:$0xf]
    %v149 = vld [vmem:[%s1 + $0x18] sm:$0xf]
    %v150 = vld [vmem:[%s1 + $0x1c] sm:$0xf]
    %v151 = vld [vmem:[%s1 + $0x20] sm:$0xf]
    %v152 = vld [vmem:[%s1 + $0x24] sm:$0xf]
    %v153 = vld [vmem:[%s1 + $0x28] sm:$0xf]
    %v154 = vld [vmem:[%s1 + $0x2c] sm:$0xf]
    %v155 = vld [vmem:[%s1 + $0x30] sm:$0xf]
    %v156 = vld [vmem:[%s1 + $0x34] sm:$0xf]
    %v157 = vld [vmem:[%s1 + $0x38] sm:$0xf]
    %v158 = vld [vmem:[%s1 + $0x3c] sm:$0xf]
    %v159 = vld [vmem:[%s1 + $0x40] sm:$0xf]
    %v160 = vld [vmem:[%s1 + $0x44] sm:$0xf]
    %v161 = vld [vmem:[%s1 + $0x48] sm:$0xf]
    %v162 = vld [vmem:[%s1 + $0x4c] sm:$0xf]
    %v163 = vld [vmem:[%s1 + $0x50] sm:$0xf]
    %v164 = vld [vmem:[%s1 + $0x54] sm:$0xf]
    %v165 = vld [vmem:[%s1 + $0x58] sm:$0xf]
    %v166 = vld [vmem:[%s1 + $0x5c] sm:$0xf]
    %v167 = vld [vmem:[%s1 + $0x60] sm:$0xf]
    %v168 = vld [vmem:[%s1 + $0x64] sm:$0xf]
    %v169 = vld [vmem:[%s1 + $0x68] sm:$0xf]
    %v170 = vld [vmem:[%s1 + $0x6c] sm:$0xf]
    %v171 = vld [vmem:[%s1 + $0x70] sm:$0xf]
    %v172 = vld [vmem:[%s1 + $0x74] sm:$0xf]
    %v173 = vld [vmem:[%s1 + $0x78] sm:$0xf]
    %v174 = vld [vmem:[%s1 + $0x7c] sm:$0xf]
    %v175 = vld [vmem:[%s1 + $0x80] sm:$0xf]
    %v176 = vld [vmem:[%s1 + $0x84] sm:$0xf]
    %v177 = vld [vmem:[%s1 + $0x88] sm:$0xf]
    %v178 = vld [vmem:[%s1 + $0x8c] sm:$0xf]
    %v179 = vld [vmem:[%s1 + $0x90] sm:$0xf]
    %v180 = vld [vmem:[%s1 + $0x94] sm:$0xf]
    %v181 = vld [vmem:[%s1 + $0x98] sm:$0xf]
    %v182 = vld [vmem:[%s1 + $0x9c] sm:$0xf]
    %v183 = vld [vmem:[%s1 + $0xa0] sm:$0xf]
    %v184 = vld [vmem:[%s1 + $0xa4] sm:$0xf]
    %v185 = vld [vmem:[%s1 + $0xa8] sm:$0xf]
    %v186 = vld [vmem:[%s1 + $0xac] sm:$0xf]
    %v187 = vld [vmem:[%s1 + $0xb0] sm:$0xf]
    %v188 = vld [vmem:[%s1 + $0xb4] sm:$0xf]
    %v189 = vld [vmem:[%s1 + $0xb8] sm:$0xf]
    %v190 = vld [vmem:[%s1 + $0xbc] sm:$0xf]
    %v191 = vld [vmem:[%s1 + $0xc0] sm:$0xf]
    %v192 = vld [vmem:[%s1 + $0xc4] sm:$0xf]
    %v193 = vld [vmem:[%s1 + $0xc8] sm:$0xf]
    %v194 = vld [vmem:[%s1 + $0xcc] sm:$0xf]
    %v195 = vld [vmem:[%s1 + $0xd0] sm:$0xf]
    %v196 = vld [vmem:[%s1 + $0xd4] sm:$0xf]
    %v197 = vld [vmem:[%s1 + $0xd8] sm:$0xf]
    %v198 = vld [vmem:[%s1 + $0xdc] sm:$0xf]
    %v199 = vld [vmem:[%s1 + $0xe0] sm:$0xf]
    %v200 = vld [vmem:[%s1 + $0xe4] sm:$0xf]
    %v201 = vld [vmem:[%s1 + $0xe8] sm:$0xf]
    %v202 = vld [vmem:[%s1 + $0xec] sm:$0xf]
    %v203 = vld [vmem:[%s1 + $0xf0] sm:$0xf]
    %v204 = vld [vmem:[%s1 + $0xf4] sm:$0xf]
    %v205 = vld [vmem:[%s1 + $0xf8] sm:$0xf]
    %v206 = vld [vmem:[%s1 + $0xfc] sm:$0xf]
    %v207 = vld [vmem:[%s1 + $0x100] sm:$0xf]
    %v208 = vld [vmem:[%s1 + $0x104] sm:$0xf]
    %v209 = vld [vmem:[%s1 + $0x108] sm:$0xf]
    %v210 = vld [vmem:[%s1 + $0x10c] sm:$0xf]
    %v211 = vld [vmem:[%s1 + $0x110] sm:$0xf]
    %v212 = vld [vmem:[%s1 + $0x114] sm:$0xf]
    %v213 = vld [vmem:[%s1 + $0x118] sm:$0xf]
    %v214 = vld [vmem:[%s1 + $0x11c] sm:$0xf]
    %v215 = vld [vmem:[%s1 + $0x120] sm:$0xf]
    %v216 = vld [vmem:[%s1 + $0x124] sm:$0xf]
    %v217 = vld [vmem:[%s1 + $0x128] sm:$0xf]
    %v218 = vld [vmem:[%s1 + $0x12c] sm:$0xf]
    %v219 = vld [vmem:[%s1 + $0x130] sm:$0xf]
    %v220 = vld [vmem:[%s1 + $0x134] sm:$0xf]
    %v221 = vld [vmem:[%s1 + $0x138] sm:$0xf]
    %v222 = vld [vmem:[%s1 + $0x13c] sm:$0xf]
    %v223 = vld [vmem:[%s1 + $0x140] sm:$0xf]
    %v224 = vld [vmem:[%s1 + $0x144] sm:$0xf]
    %v225 = vld [vmem:[%s1 + $0x148] sm:$0xf]
    %v226 = vld [vmem:[%s1 + $0x14c] sm:$0xf]
    %v227 = vld [vmem:[%s1 + $0x150] sm:$0xf]
    %v228 = vld [vmem:[%s1 + $0x154] sm:$0xf]
    %v229 = vld [vmem:[%s1 + $0x158] sm:$0xf]
    %v230 = vld [vmem:[%s1 + $0x15c] sm:$0xf]
    %v231 = vld [vmem:[%s1 + $0x160] sm:$0xf]
    %v232 = vld [vmem:[%s1 + $0x164] sm:$0xf]
    %v233 = vld [vmem:[%s1 + $0x168] sm:$0xf]
    %v234 = vld [vmem:[%s1 + $0x16c] sm:$0xf]
    %v235 = vld [vmem:[%s1 + $0x170] sm:$0xf]
    %v236 = vld [vmem:[%s1 + $0x174] sm:$0xf]
    %v237 = vld [vmem:[%s1 + $0x178] sm:$0xf]
    %v238 = vld [vmem:[%s1 + $0x17c] sm:$0xf]
    %v239 = vld [vmem:[%s1 + $0x180] sm:$0xf]
    %v240 = vld [vmem:[%s1 + $0x184] sm:$0xf]
    %v241 = vld [vmem:[%s1 + $0x188] sm:$0xf]
    %v242 = vld [vmem:[%s1 + $0x18c] sm:$0xf]
    %v243 = vld [vmem:[%s1 + $0x190] sm:$0xf]
    %v244 = vld [vmem:[%s1 + $0x194] sm:$0xf]
    %v245 = vld [vmem:[%s1 + $0x198] sm:$0xf]
    %v246 = vld [vmem:[%s1 + $0x19c] sm:$0xf]
    %v247 = vld [vmem:[%s1 + $0x1a0] sm:$0xf]
    %v248 = vld [vmem:[%s1 + $0x1a4] sm:$0xf]
    %v249 = vld [vmem:[%s1 + $0x1a8] sm:$0xf]
    %v250 = vld [vmem:[%s1 + $0x1ac] sm:$0xf]
    %v251 = vld [vmem:[%s1 + $0x1b0] sm:$0xf]
    %v252 = vld [vmem:[%s1 + $0x1b4] sm:$0xf]
    %v253 = vld [vmem:[%s1 + $0x1b8] sm:$0xf]
    %v254 = vld [vmem:[%s1 + $0x1bc] sm:$0xf]
    %v255 = vld [vmem:[%s1 + $0x1c0] sm:$0xf]
    %v256 = vld [vmem:[%s1 + $0x1c4] sm:$0xf]
    %v257 = vld [vmem:[%s1 + $0x1c8] sm:$0xf]
    %v258 = vld [vmem:[%s1 + $0x1cc] sm:$0xf]
    %v259 = vld [vmem:[%s1 + $0x1d0] sm:$0xf]
    %v260 = vld [vmem:[%s1 + $0x1d4] sm:$0xf]
    %v261 = vld [vmem:[%s1 + $0x1d8] sm:$0xf]
    %v262 = vld [vmem:[%s1 + $0x1dc] sm:$0xf]
    %v263 = vld [vmem:[%s1 + $0x1e0] sm:$0xf]
    %v264 = vld [vmem:[%s1 + $0x1e4] sm:$0xf]
    %v265 = vld [vmem:[%s1 + $0x1e8] sm:$0xf]
    %v266 = vld [vmem:[%s1 + $0x1ec] sm:$0xf]
    %v267 = vld [vmem:[%s1 + $0x1f0] sm:$0xf]
    %v268 = vld [vmem:[%s1 + $0x1f4] sm:$0xf]
    %v269 = vld [vmem:[%s1 + $0x1f8] sm:$0xf]
    %v270 = vld [vmem:[%s1 + $0x1fc] sm:$0xf]
    %v271 = vld [vmem:[%s1 + $0x200] sm:$0xf]
    %v272 = vld [vmem:[%s1 + $0x204] sm:$0xf]
    %v273 = vld [vmem:[%s1 + $0x208] sm:$0xf]
    %v274 = vld [vmem:[%s1 + $0x20c] sm:$0xf]
    %v275 = vld [vmem:[%s1 + $0x210] sm:$0xf]
    %v276 = vld [vmem:[%s1 + $0x214] sm:$0xf]
    %v277 = vld [vmem:[%s1 + $0x218] sm:$0xf]
    %v278 = vld [vmem:[%s1 + $0x21c] sm:$0xf]
    %v279 = vld [vmem:[%s1 + $0x220] sm:$0xf]
    %v280 = vld [vmem:[%s1 + $0x224] sm:$0xf]
    %v281 = vld [vmem:[%s1 + $0x228] sm:$0xf]
    %v282 = vld [vmem:[%s1 + $0x22c] sm:$0xf]
    %v283 = vld [vmem:[%s1 + $0x230] sm:$0xf]
    %v284 = vld [vmem:[%s1 + $0x234] sm:$0xf]
    %v285 = vld [vmem:[%s1 + $0x238] sm:$0xf]
    %v286 = vld [vmem:[%s1 + $0x23c] sm:$0xf]
    %v287 = vld [vmem:[%s1 + $0x240] sm:$0xf]
    %v288 = vld [vmem:[%s1 + $0x244] sm:$0xf]
    %v289 = vld [vmem:[%s1 + $0x248] sm:$0xf]
    %v290 = vld [vmem:[%s1 + $0x24c] sm:$0xf]
    %v291 = vld [vmem:[%s1 + $0x250] sm:$0xf]
    %v292 = vld [vmem:[%s1 + $0x254] sm:$0xf]
    %v293 = vld [vmem:[%s1 + $0x258] sm:$0xf]
    %v294 = vld [vmem:[%s1 + $0x25c] sm:$0xf]
    %v295 = vld [vmem:[%s1 + $0x260] sm:$0xf]
    %v296 = vld [vmem:[%s1 + $0x264] sm:$0xf]
    %v297 = vld [vmem:[%s1 + $0x268] sm:$0xf]
    %v298 = vld [vmem:[%s1 + $0x26c] sm:$0xf]
    %v299 = vld [vmem:[%s1 + $0x270] sm:$0xf]
    %v300 = vld [vmem:[%s1 + $0x274] sm:$0xf]
    %v301 = vld [vmem:[%s1 + $0x278] sm:$0xf]
    %v302 = vld [vmem:[%s1 + $0x27c] sm:$0xf]
    %v303 = vld [vmem:[%s1 + $0x280] sm:$0xf]
    %v304 = vld [vmem:[%s1 + $0x284] sm:$0xf]
    %v305 = vld [vmem:[%s1 + $0x288] sm:$0xf]
    %v306 = vld [vmem:[%s1 + $0x28c] sm:$0xf]
    %v307 = vld [vmem:[%s1 + $0x290] sm:$0xf]
    %v308 = vld [vmem:[%s1 + $0x294] sm:$0xf]
    %v309 = vld [vmem:[%s1 + $0x298] sm:$0xf]
    %v310 = vld [vmem:[%s1 + $0x29c] sm:$0xf]
    %v311 = vld [vmem:[%s1 + $0x2a0] sm:$0xf]
    %v312 = vld [vmem:[%s1 + $0x2a4] sm:$0xf]
    %v313 = vld [vmem:[%s1 + $0x2a8] sm:$0xf]
    %v314 = vld [vmem:[%s1 + $0x2ac] sm:$0xf]
    %v315 = vld [vmem:[%s1 + $0x2b0] sm:$0xf]
    %v316 = vld [vmem:[%s1 + $0x2b4] sm:$0xf]
    %v317 = vld [vmem:[%s1 + $0x2b8] sm:$0xf]
    %v318 = vld [vmem:[%s1 + $0x2bc] sm:$0xf]
    %v319 = vld [vmem:[%s1 + $0x2c0] sm:$0xf]
    %v320 = vld [vmem:[%s1 + $0x2c4] sm:$0xf]
    %v321 = vld [vmem:[%s1 + $0x2c8] sm:$0xf]
    %v322 = vld [vmem:[%s1 + $0x2cc] sm:$0xf]
    %v323 = vld [vmem:[%s1 + $0x2d0] sm:$0xf]
    %v324 = vld [vmem:[%s1 + $0x2d4] sm:$0xf]
    %v325 = vld [vmem:[%s1 + $0x2d8] sm:$0xf]
    %v326 = vld [vmem:[%s1 + $0x2dc] sm:$0xf]
    %v327 = vld [vmem:[%s1 + $0x2e0] sm:$0xf]
    %v328 = vld [vmem:[%s1 + $0x2e4] sm:$0xf]
    %v329 = vld [vmem:[%s1 + $0x2e8] sm:$0xf]
    %v330 = vld [vmem:[%s1 + $0x2ec] sm:$0xf]
    %v331 = vld [vmem:[%s1 + $0x2f0] sm:$0xf]
    %v332 = vld [vmem:[%s1 + $0x2f4] sm:$0xf]
    %v333 = vld [vmem:[%s1 + $0x2f8] sm:$0xf]
    %v334 = vld [vmem:[%s1 + $0x2fc] sm:$0xf]
    %v335 = vld [vmem:[%s1 + $0x300] sm:$0xf]
    %v336 = vld [vmem:[%s1 + $0x304] sm:$0xf]
    %v337 = vld [vmem:[%s1 + $0x308] sm:$0xf]
    %v338 = vld [vmem:[%s1 + $0x30c] sm:$0xf]
    %v339 = vld [vmem:[%s1 + $0x310] sm:$0xf]
    %v340 = vld [vmem:[%s1 + $0x314] sm:$0xf]
    %v341 = vld [vmem:[%s1 + $0x318] sm:$0xf]
    %v342 = vld [vmem:[%s1 + $0x31c] sm:$0xf]
    %v343 = vld [vmem:[%s1 + $0x320] sm:$0xf]
    %v344 = vld [vmem:[%s1 + $0x324] sm:$0xf]
    %v345 = vld [vmem:[%s1 + $0x328] sm:$0xf]
    %v346 = vld [vmem:[%s1 + $0x32c] sm:$0xf]
    %v347 = vld [vmem:[%s1 + $0x330] sm:$0xf]
    %v348 = vld [vmem:[%s1 + $0x334] sm:$0xf]
    %v349 = vld [vmem:[%s1 + $0x338] sm:$0xf]
    %v350 = vld [vmem:[%s1 + $0x33c] sm:$0xf]
    %v351 = vld [vmem:[%s1 + $0x340] sm:$0xf]
    %v352 = vld [vmem:[%s1 + $0x344] sm:$0xf]
    %v353 = vld [vmem:[%s1 + $0x348] sm:$0xf]
    %v354 = vld [vmem:[%s1 + $0x34c] sm:$0xf]
    %v355 = vld [vmem:[%s1 + $0x350] sm:$0xf]
    %v356 = vld [vmem:[%s1 + $0x354] sm:$0xf]
    %v357 = vld [vmem:[%s1 + $0x358] sm:$0xf]
    %v358 = vld [vmem:[%s1 + $0x35c] sm:$0xf]
    %v359 = vld [vmem:[%s1 + $0x360] sm:$0xf]
    %v360 = vld [vmem:[%s1 + $0x364] sm:$0xf]
    %v361 = vld [vmem:[%s1 + $0x368] sm:$0xf]
    %v362 = vld [vmem:[%s1 + $0x36c] sm:$0xf]
    %v363 = vld [vmem:[%s1 + $0x370] sm:$0xf]
    %v364 = vld [vmem:[%s1 + $0x374] sm:$0xf]
    %v365 = vld [vmem:[%s1 + $0x378] sm:$0xf]
    %v366 = vld [vmem:[%s1 + $0x37c] sm:$0xf]
    %v367 = vld [vmem:[%s1 + $0x380] sm:$0xf]
    %v368 = vld [vmem:[%s1 + $0x384] sm:$0xf]
    %v369 = vld [vmem:[%s1 + $0x388] sm:$0xf]
    %v370 = vld [vmem:[%s1 + $0x38c] sm:$0xf]
    %v371 = vld [vmem:[%s1 + $0x390] sm:$0xf]
    %v372 = vld [vmem:[%s1 + $0x394] sm:$0xf]
    %v373 = vld [vmem:[%s1 + $0x398] sm:$0xf]
    %v374 = vld [vmem:[%s1 + $0x39c] sm:$0xf]
    %v375 = vld [vmem:[%s1 + $0x3a0] sm:$0xf]
    %v376 = vld [vmem:[%s1 + $0x3a4] sm:$0xf]
    %v377 = vld [vmem:[%s1 + $0x3a8] sm:$0xf]
    %v378 = vld [vmem:[%s1 + $0x3ac] sm:$0xf]
    %v379 = vld [vmem:[%s1 + $0x3b0] sm:$0xf]
    %v380 = vld [vmem:[%s1 + $0x3b4] sm:$0xf]
    %v381 = vld [vmem:[%s1 + $0x3b8] sm:$0xf]
    %v382 = vld [vmem:[%s1 + $0x3bc] sm:$0xf]
    %v383 = vld [vmem:[%s1 + $0x3c0] sm:$0xf]
    %v384 = vld [vmem:[%s1 + $0x3c4] sm:$0xf]
    %v385 = vld [vmem:[%s1 + $0x3c8] sm:$0xf]
    %v386 = vld [vmem:[%s1 + $0x3cc] sm:$0xf]
    %v387 = vld [vmem:[%s1 + $0x3d0] sm:$0xf]
    %v388 = vld [vmem:[%s1 + $0x3d4] sm:$0xf]
    %v389 = vld [vmem:[%s1 + $0x3d8] sm:$0xf]
    %v390 = vld [vmem:[%s1 + $0x3dc] sm:$0xf]
    %v391 = vld [vmem:[%s1 + $0x3e0] sm:$0xf]
    %v392 = vld [vmem:[%s1 + $0x3e4] sm:$0xf]
    %v393 = vld [vmem:[%s1 + $0x3e8] sm:$0xf]
    %v394 = vld [vmem:[%s1 + $0x3ec] sm:$0xf]
    %v395 = vld [vmem:[%s1 + $0x3f0] sm:$0xf]
    %v396 = vld [vmem:[%s1 + $0x3f4] sm:$0xf]
    %v397 = vld [vmem:[%s1 + $0x3f8] sm:$0xf]
    %v398 = vld [vmem:[%s1 + $0x3fc] sm:$0xf]
    %v399 = vld [vmem:[%s1 + $0x400] sm:$0xf]
    %v400 = vld [vmem:[%s1 + $0x404] sm:$0xf]
    %v401 = vld [vmem:[%s1 + $0x408] sm:$0xf]
    %v402 = vld [vmem:[%s1 + $0x40c] sm:$0xf]
    %v403 = vld [vmem:[%s1 + $0x410] sm:$0xf]
    %v404 = vld [vmem:[%s1 + $0x414] sm:$0xf]
    %v405 = vld [vmem:[%s1 + $0x418] sm:$0xf]
    %v406 = vld [vmem:[%s1 + $0x41c] sm:$0xf]
    %v407 = vld [vmem:[%s1 + $0x420] sm:$0xf]
    %v408 = vld [vmem:[%s1 + $0x424] sm:$0xf]
    %v409 = vld [vmem:[%s1 + $0x428] sm:$0xf]
    %v410 = vld [vmem:[%s1 + $0x42c] sm:$0xf]
    %v411 = vld [vmem:[%s1 + $0x430] sm:$0xf]
    %v412 = vld [vmem:[%s1 + $0x434] sm:$0xf]
    %v413 = vld [vmem:[%s1 + $0x438] sm:$0xf]
    %v414 = vld [vmem:[%s1 + $0x43c] sm:$0xf]
    %v415 = vld [vmem:[%s1 + $0x440] sm:$0xf]
    %v416 = vld [vmem:[%s1 + $0x444] sm:$0xf]
    %v417 = vld [vmem:[%s1 + $0x448] sm:$0xf]
    %v418 = vld [vmem:[%s1 + $0x44c] sm:$0xf]
    %v419 = vld [vmem:[%s1 + $0x450] sm:$0xf]
    %v420 = vld [vmem:[%s1 + $0x454] sm:$0xf]
    %v421 = vld [vmem:[%s1 + $0x458] sm:$0xf]
    %v422 = vld [vmem:[%s1 + $0x45c] sm:$0xf]
    %v423 = vld [vmem:[%s1 + $0x460] sm:$0xf]
    %v424 = vld [vmem:[%s1 + $0x464] sm:$0xf]
    %v425 = vld [vmem:[%s1 + $0x468] sm:$0xf]
    %v426 = vld [vmem:[%s1 + $0x46c] sm:$0xf]
    %v427 = vld [vmem:[%s1 + $0x470] sm:$0xf]
    %v428 = vld [vmem:[%s1 + $0x474] sm:$0xf]
    %v429 = vld [vmem:[%s1 + $0x478] sm:$0xf]
    %v430 = vld [vmem:[%s1 + $0x47c] sm:$0xf]
    %v431 = vld [vmem:[%s1 + $0x480] sm:$0xf]
    %v432 = vld [vmem:[%s1 + $0x484] sm:$0xf]
    %v433 = vld [vmem:[%s1 + $0x488] sm:$0xf]
    %v434 = vld [vmem:[%s1 + $0x48c] sm:$0xf]
    %v435 = vld [vmem:[%s1 + $0x490] sm:$0xf]
    %v436 = vld [vmem:[%s1 + $0x494] sm:$0xf]
    %v437 = vld [vmem:[%s1 + $0x498] sm:$0xf]
    %v438 = vld [vmem:[%s1 + $0x49c] sm:$0xf]
    %v439 = vld [vmem:[%s1 + $0x4a0] sm:$0xf]
    %v440 = vld [vmem:[%s1 + $0x4a4] sm:$0xf]
    %v441 = vld [vmem:[%s1 + $0x4a8] sm:$0xf]
    %v442 = vld [vmem:[%s1 + $0x4ac] sm:$0xf]
    %v443 = vld [vmem:[%s1 + $0x4b0] sm:$0xf]
    %v444 = vld [vmem:[%s1 + $0x4b4] sm:$0xf]
    %v445 = vld [vmem:[%s1 + $0x4b8] sm:$0xf]
    %v446 = vld [vmem:[%s1 + $0x4bc] sm:$0xf]
    %v447 = vld [vmem:[%s1 + $0x4c0] sm:$0xf]
    %v448 = vld [vmem:[%s1 + $0x4c4] sm:$0xf]
    %v449 = vld [vmem:[%s1 + $0x4c8] sm:$0xf]
    %v450 = vld [vmem:[%s1 + $0x4cc] sm:$0xf]
    %v451 = vld [vmem:[%s1 + $0x4d0] sm:$0xf]
    %v452 = vld [vmem:[%s1 + $0x4d4] sm:$0xf]
    %v453 = vld [vmem:[%s1 + $0x4d8] sm:$0xf]
    %v454 = vld [vmem:[%s1 + $0x4dc] sm:$0xf]
    %v455 = vld [vmem:[%s1 + $0x4e0] sm:$0xf]
    %v456 = vld [vmem:[%s1 + $0x4e4] sm:$0xf]
    %v457 = vld [vmem:[%s1 + $0x4e8] sm:$0xf]
    %v458 = vld [vmem:[%s1 + $0x4ec] sm:$0xf]
    %v459 = vld [vmem:[%s1 + $0x4f0] sm:$0xf]
    %v460 = vld [vmem:[%s1 + $0x4f4] sm:$0xf]
    %v461 = vld [vmem:[%s1 + $0x4f8] sm:$0xf]
    %v462 = vld [vmem:[%s1 + $0x4fc] sm:$0xf]
    %v463 = vld [vmem:[%s1 + $0x500] sm:$0xf]
    %v464 = vld [vmem:[%s1 + $0x504] sm:$0xf]
    %v465 = vld [vmem:[%s1 + $0x508] sm:$0xf]
    %v466 = vld [vmem:[%s1 + $0x50c] sm:$0xf]
    %v467 = vld [vmem:[%s1 + $0x510] sm:$0xf]
    %v468 = vld [vmem:[%s1 + $0x514] sm:$0xf]
    %v469 = vld [vmem:[%s1 + $0x518] sm:$0xf]
    %v470 = vld [vmem:[%s1 + $0x51c] sm:$0xf]
    %v471 = vld [vmem:[%s1 + $0x520] sm:$0xf]
    %v472 = vld [vmem:[%s1 + $0x524] sm:$0xf]
    %v473 = vld [vmem:[%s1 + $0x528] sm:$0xf]
    %v474 = vld [vmem:[%s1 + $0x52c] sm:$0xf]
    %v475 = vld [vmem:[%s1 + $0x530] sm:$0xf]
    %v476 = vld [vmem:[%s1 + $0x534] sm:$0xf]
    %v477 = vld [vmem:[%s1 + $0x538] sm:$0xf]
    %v478 = vld [vmem:[%s1 + $0x53c] sm:$0xf]
    %v479 = vld [vmem:[%s1 + $0x540] sm:$0xf]
    %v480 = vld [vmem:[%s1 + $0x544] sm:$0xf]
    %v481 = vld [vmem:[%s1 + $0x548] sm:$0xf]
    %v482 = vld [vmem:[%s1 + $0x54c] sm:$0xf]
    %v483 = vld [vmem:[%s1 + $0x550] sm:$0xf]
    %v484 = vld [vmem:[%s1 + $0x554] sm:$0xf]
    %v485 = vld [vmem:[%s1 + $0x558] sm:$0xf]
    %v486 = vld [vmem:[%s1 + $0x55c] sm:$0xf]
    %v487 = vld [vmem:[%s1 + $0x560] sm:$0xf]
    %v488 = vld [vmem:[%s1 + $0x564] sm:$0xf]
    %v489 = vld [vmem:[%s1 + $0x568] sm:$0xf]
    %v490 = vld [vmem:[%s1 + $0x56c] sm:$0xf]
    %v491 = vld [vmem:[%s1 + $0x570] sm:$0xf]
    %v492 = vld [vmem:[%s1 + $0x574] sm:$0xf]
    %v493 = vld [vmem:[%s1 + $0x578] sm:$0xf]
    %v494 = vld [vmem:[%s1 + $0x57c] sm:$0xf]
    %v495 = vld [vmem:[%s1 + $0x580] sm:$0xf]
    %v496 = vld [vmem:[%s1 + $0x584] sm:$0xf]
    %v497 = vld [vmem:[%s1 + $0x588] sm:$0xf]
    %v498 = vld [vmem:[%s1 + $0x58c] sm:$0xf]
    %v499 = vld [vmem:[%s1 + $0x590] sm:$0xf]
    %v500 = vld [vmem:[%s1 + $0x594] sm:$0xf]
    %v501 = vld [vmem:[%s1 + $0x598] sm:$0xf]
    %v502 = vld [vmem:[%s1 + $0x59c] sm:$0xf]
    %v503 = vld [vmem:[%s1 + $0x5a0] sm:$0xf]
    %v504 = vld [vmem:[%s1 + $0x5a4] sm:$0xf]
    %v505 = vld [vmem:[%s1 + $0x5a8] sm:$0xf]
    %v506 = vld [vmem:[%s1 + $0x5ac] sm:$0xf]
    %v507 = vld [vmem:[%s1 + $0x5b0] sm:$0xf]
    %v508 = vld [vmem:[%s1 + $0x5b4] sm:$0xf]
    %v509 = vld [vmem:[%s1 + $0x5b8] sm:$0xf]
    %v510 = vld [vmem:[%s1 + $0x5bc] sm:$0xf]
    %v511 = vld [vmem:[%s1 + $0x5c0] sm:$0xf]
    %v512 = vld [vmem:[%s1 + $0x5c4] sm:$0xf]
    %v513 = vld [vmem:[%s1 + $0x5c8] sm:$0xf]
    %v514 = vld [vmem:[%s1 + $0x5cc] sm:$0xf]
    %v515 = vld [vmem:[%s1 + $0x5d0] sm:$0xf]
    %v516 = vld [vmem:[%s1 + $0x5d4] sm:$0xf]
    %v517 = vld [vmem:[%s1 + $0x5d8] sm:$0xf]
    %v518 = vld [vmem:[%s1 + $0x5dc] sm:$0xf]
    %v519 = vld [vmem:[%s1 + $0x5e0] sm:$0xf]
    %v520 = vld [vmem:[%s1 + $0x5e4] sm:$0xf]
    %v521 = vld [vmem:[%s1 + $0x5e8] sm:$0xf]
    %v522 = vld [vmem:[%s1 + $0x5ec] sm:$0xf]
    %v523 = vld [vmem:[%s1 + $0x5f0] sm:$0xf]
    %v524 = vld [vmem:[%s1 + $0x5f4] sm:$0xf]
    %v525 = vld [vmem:[%s1 + $0x5f8] sm:$0xf]
    %v526 = vld [vmem:[%s1 + $0x5fc] sm:$0xf]
    %v527 = vld [vmem:[%s1 + $0x600] sm:$0xf]
    %v528 = vld [vmem:[%s1 + $0x604] sm:$0xf]
    %v529 = vld [vmem:[%s1 + $0x608] sm:$0xf]
    %v530 = vld [vmem:[%s1 + $0x60c] sm:$0xf]
    %v531 = vld [vmem:[%s1 + $0x610] sm:$0xf]
    %v532 = vld [vmem:[%s1 + $0x614] sm:$0xf]
    %v533 = vld [vmem:[%s1 + $0x618] sm:$0xf]
    %v534 = vld [vmem:[%s1 + $0x61c] sm:$0xf]
    %v535 = vld [vmem:[%s1 + $0x620] sm:$0xf]
    %v536 = vld [vmem:[%s1 + $0x624] sm:$0xf]
    %v537 = vld [vmem:[%s1 + $0x628] sm:$0xf]
    %v538 = vld [vmem:[%s1 + $0x62c] sm:$0xf]
    %v539 = vld [vmem:[%s1 + $0x630] sm:$0xf]
    %v540 = vld [vmem:[%s1 + $0x634] sm:$0xf]
    %v541 = vld [vmem:[%s1 + $0x638] sm:$0xf]
    %v542 = vld [vmem:[%s1 + $0x63c] sm:$0xf]
    %v543 = vld [vmem:[%s1 + $0x640] sm:$0xf]
    %v544 = vld [vmem:[%s1 + $0x644] sm:$0xf]
    %v545 = vld [vmem:[%s1 + $0x648] sm:$0xf]
    %v546 = vld [vmem:[%s1 + $0x64c] sm:$0xf]
    %v547 = vld [vmem:[%s1 + $0x650] sm:$0xf]
    %v548 = vld [vmem:[%s1 + $0x654] sm:$0xf]
    %v549 = vld [vmem:[%s1 + $0x658] sm:$0xf]
    %v550 = vld [vmem:[%s1 + $0x65c] sm:$0xf]
    %v551 = vld [vmem:[%s1 + $0x660] sm:$0xf]
    %v552 = vld [vmem:[%s1 + $0x664] sm:$0xf]
    %v553 = vld [vmem:[%s1 + $0x668] sm:$0xf]
    %v554 = vld [vmem:[%s1 + $0x66c] sm:$0xf]
    %v555 = vld [vmem:[%s1 + $0x670] sm:$0xf]
    %v556 = vld [vmem:[%s1 + $0x674] sm:$0xf]
    %v557 = vld [vmem:[%s1 + $0x678] sm:$0xf]
    %v558 = vld [vmem:[%s1 + $0x67c] sm:$0xf]
    %v559 = vld [vmem:[%s1 + $0x680] sm:$0xf]
    %v560 = vld [vmem:[%s1 + $0x684] sm:$0xf]
    %v561 = vld [vmem:[%s1 + $0x688] sm:$0xf]
    %v562 = vld [vmem:[%s1 + $0x68c] sm:$0xf]
    %v563 = vld [vmem:[%s1 + $0x690] sm:$0xf]
    %v564 = vld [vmem:[%s1 + $0x694] sm:$0xf]
    %v565 = vld [vmem:[%s1 + $0x698] sm:$0xf]
    %v566 = vld [vmem:[%s1 + $0x69c] sm:$0xf]
    %v567 = vld [vmem:[%s1 + $0x6a0] sm:$0xf]
    %v568 = vld [vmem:[%s1 + $0x6a4] sm:$0xf]
    %v569 = vld [vmem:[%s1 + $0x6a8] sm:$0xf]
    %v570 = vld [vmem:[%s1 + $0x6ac] sm:$0xf]
    %v571 = vld [vmem:[%s1 + $0x6b0] sm:$0xf]
    %v572 = vld [vmem:[%s1 + $0x6b4] sm:$0xf]
    %v573 = vld [vmem:[%s1 + $0x6b8] sm:$0xf]
    %v574 = vld [vmem:[%s1 + $0x6bc] sm:$0xf]
    %v575 = vld [vmem:[%s1 + $0x6c0] sm:$0xf]
    %v576 = vld [vmem:[%s1 + $0x6c4] sm:$0xf]
    %v577 = vld [vmem:[%s1 + $0x6c8] sm:$0xf]
    %v578 = vld [vmem:[%s1 + $0x6cc] sm:$0xf]
    %v579 = vld [vmem:[%s1 + $0x6d0] sm:$0xf]
    %v580 = vld [vmem:[%s1 + $0x6d4] sm:$0xf]
    %v581 = vld [vmem:[%s1 + $0x6d8] sm:$0xf]
    %v582 = vld [vmem:[%s1 + $0x6dc] sm:$0xf]
    %v583 = vld [vmem:[%s1 + $0x6e0] sm:$0xf]
    %v584 = vld [vmem:[%s1 + $0x6e4] sm:$0xf]
    %v585 = vld [vmem:[%s1 + $0x6e8] sm:$0xf]
    %v586 = vld [vmem:[%s1 + $0x6ec] sm:$0xf]
    %v587 = vld [vmem:[%s1 + $0x6f0] sm:$0xf]
    %v588 = vld [vmem:[%s1 + $0x6f4] sm:$0xf]
    %v589 = vld [vmem:[%s1 + $0x6f8] sm:$0xf]
    %v590 = vld [vmem:[%s1 + $0x6fc] sm:$0xf]
    %v591 = vld [vmem:[%s1 + $0x700] sm:$0xf]
    %v592 = vld [vmem:[%s1 + $0x704] sm:$0xf]
    %v593 = vld [vmem:[%s1 + $0x708] sm:$0xf]
    %v594 = vld [vmem:[%s1 + $0x70c] sm:$0xf]
    %v595 = vld [vmem:[%s1 + $0x710] sm:$0xf]
    %v596 = vld [vmem:[%s1 + $0x714] sm:$0xf]
    %v597 = vld [vmem:[%s1 + $0x718] sm:$0xf]
    %v598 = vld [vmem:[%s1 + $0x71c] sm:$0xf]
    %v599 = vld [vmem:[%s1 + $0x720] sm:$0xf]
    %v600 = vld [vmem:[%s1 + $0x724] sm:$0xf]
    %v601 = vld [vmem:[%s1 + $0x728] sm:$0xf]
    %v602 = vld [vmem:[%s1 + $0x72c] sm:$0xf]
    %v603 = vld [vmem:[%s1 + $0x730] sm:$0xf]
    %v604 = vld [vmem:[%s1 + $0x734] sm:$0xf]
    %v605 = vld [vmem:[%s1 + $0x738] sm:$0xf]
    %v606 = vld [vmem:[%s1 + $0x73c] sm:$0xf]
    %v607 = vld [vmem:[%s1 + $0x740] sm:$0xf]
    %v608 = vld [vmem:[%s1 + $0x744] sm:$0xf]
    %v609 = vld [vmem:[%s1 + $0x748] sm:$0xf]
    %v610 = vld [vmem:[%s1 + $0x74c] sm:$0xf]
    %v611 = vld [vmem:[%s1 + $0x750] sm:$0xf]
    %v612 = vld [vmem:[%s1 + $0x754] sm:$0xf]
    %v613 = vld [vmem:[%s1 + $0x758] sm:$0xf]
    %v614 = vld [vmem:[%s1 + $0x75c] sm:$0xf]
    %v615 = vld [vmem:[%s1 + $0x760] sm:$0xf]
    %v616 = vld [vmem:[%s1 + $0x764] sm:$0xf]
    %v617 = vld [vmem:[%s1 + $0x768] sm:$0xf]
    %v618 = vld [vmem:[%s1 + $0x76c] sm:$0xf]
    %v619 = vld [vmem:[%s1 + $0x770] sm:$0xf]
    %v620 = vld [vmem:[%s1 + $0x774] sm:$0xf]
    %v621 = vld [vmem:[%s1 + $0x778] sm:$0xf]
    %v622 = vld [vmem:[%s1 + $0x77c] sm:$0xf]
    %v623 = vld [vmem:[%s1 + $0x780] sm:$0xf]
    %v624 = vld [vmem:[%s1 + $0x784] sm:$0xf]
    %v625 = vld [vmem:[%s1 + $0x788] sm:$0xf]
    %v626 = vld [vmem:[%s1 + $0x78c] sm:$0xf]
    %v627 = vld [vmem:[%s1 + $0x790] sm:$0xf]
    %v628 = vld [vmem:[%s1 + $0x794] sm:$0xf]
    %v629 = vld [vmem:[%s1 + $0x798] sm:$0xf]
    %v630 = vld [vmem:[%s1 + $0x79c] sm:$0xf]
    %v631 = vld [vmem:[%s1 + $0x7a0] sm:$0xf]
    %v632 = vld [vmem:[%s1 + $0x7a4] sm:$0xf]
    %v633 = vld [vmem:[%s1 + $0x7a8] sm:$0xf]
    %v634 = vld [vmem:[%s1 + $0x7ac] sm:$0xf]
    %v635 = vld [vmem:[%s1 + $0x7b0] sm:$0xf]
    %v636 = vld [vmem:[%s1 + $0x7b4] sm:$0xf]
    %v637 = vld [vmem:[%s1 + $0x7b8] sm:$0xf]
    %v638 = vld [vmem:[%s1 + $0x7bc] sm:$0xf]
    %v639 = vld [vmem:[%s1 + $0x7c0] sm:$0xf]
    %v640 = vld [vmem:[%s1 + $0x7c4] sm:$0xf]
    %v641 = vld [vmem:[%s1 + $0x7c8] sm:$0xf]
    %v642 = vld [vmem:[%s1 + $0x7cc] sm:$0xf]
    %v643 = vld [vmem:[%s1 + $0x7d0] sm:$0xf]
    %v644 = vld [vmem:[%s1 + $0x7d4] sm:$0xf]
    %v645 = vld [vmem:[%s1 + $0x7d8] sm:$0xf]
    %v646 = vld [vmem:[%s1 + $0x7dc] sm:$0xf]
    %v647 = vld [vmem:[%s1 + $0x7e0] sm:$0xf]
    %v648 = vld [vmem:[%s1 + $0x7e4] sm:$0xf]
    %v649 = vld [vmem:[%s1 + $0x7e8] sm:$0xf]
    %v650 = vld [vmem:[%s1 + $0x7ec] sm:$0xf]
    %v651 = vld [vmem:[%s1 + $0x7f0] sm:$0xf]
    %v652 = vld [vmem:[%s1 + $0x7f4] sm:$0xf]
    %v653 = vld [vmem:[%s1 + $0x7f8] sm:$0xf]
    %v654 = vld [vmem:[%s1 + $0x7fc] sm:$0xf]
    %v1167 = vunpack.c.l.b16 %v143
    %v1168 = vunpack.c.l.b16 %v144
    %v1169 = vunpack.c.l.b16 %v145
    %v1170 = vunpack.c.l.b16 %v146
    %v1171 = vunpack.c.l.b16 %v147
    %v1172 = vunpack.c.l.b16 %v148
    %v1173 = vunpack.c.l.b16 %v149
    %v1174 = vunpack.c.l.b16 %v150
    %v1175 = vunpack.c.l.b16 %v151
    %v1176 = vunpack.c.l.b16 %v152
    %v1177 = vunpack.c.l.b16 %v153
    %v1178 = vunpack.c.l.b16 %v154
    %v1179 = vunpack.c.l.b16 %v155
    %v1180 = vunpack.c.l.b16 %v156
    %v1181 = vunpack.c.l.b16 %v157
    %v1182 = vunpack.c.l.b16 %v158
    %v1183 = vunpack.c.l.b16 %v159
    %v1184 = vunpack.c.l.b16 %v160
    %v1185 = vunpack.c.l.b16 %v161
    %v1186 = vunpack.c.l.b16 %v162
    %v1187 = vunpack.c.l.b16 %v163
    %v1188 = vunpack.c.l.b16 %v164
    %v1189 = vunpack.c.l.b16 %v165
    %v1190 = vunpack.c.l.b16 %v166
    %v1191 = vunpack.c.l.b16 %v167
    %v1192 = vunpack.c.l.b16 %v168
    %v1193 = vunpack.c.l.b16 %v169
    %v1194 = vunpack.c.l.b16 %v170
    %v1195 = vunpack.c.l.b16 %v171
    %v1196 = vunpack.c.l.b16 %v172
    %v1197 = vunpack.c.l.b16 %v173
    %v1198 = vunpack.c.l.b16 %v174
    %v1199 = vunpack.c.l.b16 %v175
    %v1200 = vunpack.c.l.b16 %v176
    %v1201 = vunpack.c.l.b16 %v177
    %v1202 = vunpack.c.l.b16 %v178
    %v1203 = vunpack.c.l.b16 %v179
    %v1204 = vunpack.c.l.b16 %v180
    %v1205 = vunpack.c.l.b16 %v181
    %v1206 = vunpack.c.l.b16 %v182
    %v1207 = vunpack.c.l.b16 %v183
    %v1208 = vunpack.c.l.b16 %v184
    %v1209 = vunpack.c.l.b16 %v185
    %v1210 = vunpack.c.l.b16 %v186
    %v1211 = vunpack.c.l.b16 %v187
    %v1212 = vunpack.c.l.b16 %v188
    %v1213 = vunpack.c.l.b16 %v189
    %v1214 = vunpack.c.l.b16 %v190
    %v1215 = vunpack.c.l.b16 %v191
    %v1216 = vunpack.c.l.b16 %v192
    %v1217 = vunpack.c.l.b16 %v193
    %v1218 = vunpack.c.l.b16 %v194
    %v1219 = vunpack.c.l.b16 %v195
    %v1220 = vunpack.c.l.b16 %v196
    %v1221 = vunpack.c.l.b16 %v197
    %v1222 = vunpack.c.l.b16 %v198
    %v1223 = vunpack.c.l.b16 %v199
    %v1224 = vunpack.c.l.b16 %v200
    %v1225 = vunpack.c.l.b16 %v201
    %v1226 = vunpack.c.l.b16 %v202
    %v1227 = vunpack.c.l.b16 %v203
    %v1228 = vunpack.c.l.b16 %v204
    %v1229 = vunpack.c.l.b16 %v205
    %v1230 = vunpack.c.l.b16 %v206
    %v1231 = vunpack.c.l.b16 %v207
    %v1232 = vunpack.c.l.b16 %v208
    %v1233 = vunpack.c.l.b16 %v209
    %v1234 = vunpack.c.l.b16 %v210
    %v1235 = vunpack.c.l.b16 %v211
    %v1236 = vunpack.c.l.b16 %v212
    %v1237 = vunpack.c.l.b16 %v213
    %v1238 = vunpack.c.l.b16 %v214
    %v1239 = vunpack.c.l.b16 %v215
    %v1240 = vunpack.c.l.b16 %v216
    %v1241 = vunpack.c.l.b16 %v217
    %v1242 = vunpack.c.l.b16 %v218
    %v1243 = vunpack.c.l.b16 %v219
    %v1244 = vunpack.c.l.b16 %v220
    %v1245 = vunpack.c.l.b16 %v221
    %v1246 = vunpack.c.l.b16 %v222
    %v1247 = vunpack.c.l.b16 %v223
    %v1248 = vunpack.c.l.b16 %v224
    %v1249 = vunpack.c.l.b16 %v225
    %v1250 = vunpack.c.l.b16 %v226
    %v1251 = vunpack.c.l.b16 %v227
    %v1252 = vunpack.c.l.b16 %v228
    %v1253 = vunpack.c.l.b16 %v229
    %v1254 = vunpack.c.l.b16 %v230
    %v1255 = vunpack.c.l.b16 %v231
    %v1256 = vunpack.c.l.b16 %v232
    %v1257 = vunpack.c.l.b16 %v233
    %v1258 = vunpack.c.l.b16 %v234
    %v1259 = vunpack.c.l.b16 %v235
    %v1260 = vunpack.c.l.b16 %v236
    %v1261 = vunpack.c.l.b16 %v237
    %v1262 = vunpack.c.l.b16 %v238
    %v1263 = vunpack.c.l.b16 %v239
    %v1264 = vunpack.c.l.b16 %v240
    %v1265 = vunpack.c.l.b16 %v241
    %v1266 = vunpack.c.l.b16 %v242
    %v1267 = vunpack.c.l.b16 %v243
    %v1268 = vunpack.c.l.b16 %v244
    %v1269 = vunpack.c.l.b16 %v245
    %v1270 = vunpack.c.l.b16 %v246
    %v1271 = vunpack.c.l.b16 %v247
    %v1272 = vunpack.c.l.b16 %v248
    %v1273 = vunpack.c.l.b16 %v249
    %v1274 = vunpack.c.l.b16 %v250
    %v1275 = vunpack.c.l.b16 %v251
    %v1276 = vunpack.c.l.b16 %v252
    %v1277 = vunpack.c.l.b16 %v253
    %v1278 = vunpack.c.l.b16 %v254
    %v1279 = vunpack.c.l.b16 %v255
    %v1280 = vunpack.c.l.b16 %v256
    %v1281 = vunpack.c.l.b16 %v257
    %v1282 = vunpack.c.l.b16 %v258
    %v1283 = vunpack.c.l.b16 %v259
    %v1284 = vunpack.c.l.b16 %v260
    %v1285 = vunpack.c.l.b16 %v261
    %v1286 = vunpack.c.l.b16 %v262
    %v1287 = vunpack.c.l.b16 %v263
    %v1288 = vunpack.c.l.b16 %v264
    %v1289 = vunpack.c.l.b16 %v265
    %v1290 = vunpack.c.l.b16 %v266
    %v1291 = vunpack.c.l.b16 %v267
    %v1292 = vunpack.c.l.b16 %v268
    %v1293 = vunpack.c.l.b16 %v269
    %v1294 = vunpack.c.l.b16 %v270
    %v1295 = vunpack.c.l.b16 %v271
    %v1296 = vunpack.c.l.b16 %v272
    %v1297 = vunpack.c.l.b16 %v273
    %v1298 = vunpack.c.l.b16 %v274
    %v1299 = vunpack.c.l.b16 %v275
    %v1300 = vunpack.c.l.b16 %v276
    %v1301 = vunpack.c.l.b16 %v277
    %v1302 = vunpack.c.l.b16 %v278
    %v1303 = vunpack.c.l.b16 %v279
    %v1304 = vunpack.c.l.b16 %v280
    %v1305 = vunpack.c.l.b16 %v281
    %v1306 = vunpack.c.l.b16 %v282
    %v1307 = vunpack.c.l.b16 %v283
    %v1308 = vunpack.c.l.b16 %v284
    %v1309 = vunpack.c.l.b16 %v285
    %v1310 = vunpack.c.l.b16 %v286
    %v1311 = vunpack.c.l.b16 %v287
    %v1312 = vunpack.c.l.b16 %v288
    %v1313 = vunpack.c.l.b16 %v289
    %v1314 = vunpack.c.l.b16 %v290
    %v1315 = vunpack.c.l.b16 %v291
    %v1316 = vunpack.c.l.b16 %v292
    %v1317 = vunpack.c.l.b16 %v293
    %v1318 = vunpack.c.l.b16 %v294
    %v1319 = vunpack.c.l.b16 %v295
    %v1320 = vunpack.c.l.b16 %v296
    %v1321 = vunpack.c.l.b16 %v297
    %v1322 = vunpack.c.l.b16 %v298
    %v1323 = vunpack.c.l.b16 %v299
    %v1324 = vunpack.c.l.b16 %v300
    %v1325 = vunpack.c.l.b16 %v301
    %v1326 = vunpack.c.l.b16 %v302
    %v1327 = vunpack.c.l.b16 %v303
    %v1328 = vunpack.c.l.b16 %v304
    %v1329 = vunpack.c.l.b16 %v305
    %v1330 = vunpack.c.l.b16 %v306
    %v1331 = vunpack.c.l.b16 %v307
    %v1332 = vunpack.c.l.b16 %v308
    %v1333 = vunpack.c.l.b16 %v309
    %v1334 = vunpack.c.l.b16 %v310
    %v1335 = vunpack.c.l.b16 %v311
    %v1336 = vunpack.c.l.b16 %v312
    %v1337 = vunpack.c.l.b16 %v313
    %v1338 = vunpack.c.l.b16 %v314
    %v1339 = vunpack.c.l.b16 %v315
    %v1340 = vunpack.c.l.b16 %v316
    %v1341 = vunpack.c.l.b16 %v317
    %v1342 = vunpack.c.l.b16 %v318
    %v1343 = vunpack.c.l.b16 %v319
    %v1344 = vunpack.c.l.b16 %v320
    %v1345 = vunpack.c.l.b16 %v321
    %v1346 = vunpack.c.l.b16 %v322
    %v1347 = vunpack.c.l.b16 %v323
    %v1348 = vunpack.c.l.b16 %v324
    %v1349 = vunpack.c.l.b16 %v325
    %v1350 = vunpack.c.l.b16 %v326
    %v1351 = vunpack.c.l.b16 %v327
    %v1352 = vunpack.c.l.b16 %v328
    %v1353 = vunpack.c.l.b16 %v329
    %v1354 = vunpack.c.l.b16 %v330
    %v1355 = vunpack.c.l.b16 %v331
    %v1356 = vunpack.c.l.b16 %v332
    %v1357 = vunpack.c.l.b16 %v333
    %v1358 = vunpack.c.l.b16 %v334
    %v1359 = vunpack.c.l.b16 %v335
    %v1360 = vunpack.c.l.b16 %v336
    %v1361 = vunpack.c.l.b16 %v337
    %v1362 = vunpack.c.l.b16 %v338
    %v1363 = vunpack.c.l.b16 %v339
    %v1364 = vunpack.c.l.b16 %v340
    %v1365 = vunpack.c.l.b16 %v341
    %v1366 = vunpack.c.l.b16 %v342
    %v1367 = vunpack.c.l.b16 %v343
    %v1368 = vunpack.c.l.b16 %v344
    %v1369 = vunpack.c.l.b16 %v345
    %v1370 = vunpack.c.l.b16 %v346
    %v1371 = vunpack.c.l.b16 %v347
    %v1372 = vunpack.c.l.b16 %v348
    %v1373 = vunpack.c.l.b16 %v349
    %v1374 = vunpack.c.l.b16 %v350
    %v1375 = vunpack.c.l.b16 %v351
    %v1376 = vunpack.c.l.b16 %v352
    %v1377 = vunpack.c.l.b16 %v353
    %v1378 = vunpack.c.l.b16 %v354
    %v1379 = vunpack.c.l.b16 %v355
    %v1380 = vunpack.c.l.b16 %v356
    %v1381 = vunpack.c.l.b16 %v357
    %v1382 = vunpack.c.l.b16 %v358
    %v1383 = vunpack.c.l.b16 %v359
    %v1384 = vunpack.c.l.b16 %v360
    %v1385 = vunpack.c.l.b16 %v361
    %v1386 = vunpack.c.l.b16 %v362
    %v1387 = vunpack.c.l.b16 %v363
    %v1388 = vunpack.c.l.b16 %v364
    %v1389 = vunpack.c.l.b16 %v365
    %v1390 = vunpack.c.l.b16 %v366
    %v1391 = vunpack.c.l.b16 %v367
    %v1392 = vunpack.c.l.b16 %v368
    %v1393 = vunpack.c.l.b16 %v369
    %v1394 = vunpack.c.l.b16 %v370
    %v1395 = vunpack.c.l.b16 %v371
    %v1396 = vunpack.c.l.b16 %v372
    %v1397 = vunpack.c.l.b16 %v373
    %v1398 = vunpack.c.l.b16 %v374
    %v1399 = vunpack.c.l.b16 %v375
    %v1400 = vunpack.c.l.b16 %v376
    %v1401 = vunpack.c.l.b16 %v377
    %v1402 = vunpack.c.l.b16 %v378
    %v1403 = vunpack.c.l.b16 %v379
    %v1404 = vunpack.c.l.b16 %v380
    %v1405 = vunpack.c.l.b16 %v381
    %v1406 = vunpack.c.l.b16 %v382
    %v1407 = vunpack.c.l.b16 %v383
    %v1408 = vunpack.c.l.b16 %v384
    %v1409 = vunpack.c.l.b16 %v385
    %v1410 = vunpack.c.l.b16 %v386
    %v1411 = vunpack.c.l.b16 %v387
    %v1412 = vunpack.c.l.b16 %v388
    %v1413 = vunpack.c.l.b16 %v389
    %v1414 = vunpack.c.l.b16 %v390
    %v1415 = vunpack.c.l.b16 %v391
    %v1416 = vunpack.c.l.b16 %v392
    %v1417 = vunpack.c.l.b16 %v393
    %v1418 = vunpack.c.l.b16 %v394
    %v1419 = vunpack.c.l.b16 %v395
    %v1420 = vunpack.c.l.b16 %v396
    %v1421 = vunpack.c.l.b16 %v397
    %v1422 = vunpack.c.l.b16 %v398
    %v1423 = vunpack.c.l.b16 %v399
    %v1424 = vunpack.c.l.b16 %v400
    %v1425 = vunpack.c.l.b16 %v401
    %v1426 = vunpack.c.l.b16 %v402
    %v1427 = vunpack.c.l.b16 %v403
    %v1428 = vunpack.c.l.b16 %v404
    %v1429 = vunpack.c.l.b16 %v405
    %v1430 = vunpack.c.l.b16 %v406
    %v1431 = vunpack.c.l.b16 %v407
    %v1432 = vunpack.c.l.b16 %v408
    %v1433 = vunpack.c.l.b16 %v409
    %v1434 = vunpack.c.l.b16 %v410
    %v1435 = vunpack.c.l.b16 %v411
    %v1436 = vunpack.c.l.b16 %v412
    %v1437 = vunpack.c.l.b16 %v413
    %v1438 = vunpack.c.l.b16 %v414
    %v1439 = vunpack.c.l.b16 %v415
    %v1440 = vunpack.c.l.b16 %v416
    %v1441 = vunpack.c.l.b16 %v417
    %v1442 = vunpack.c.l.b16 %v418
    %v1443 = vunpack.c.l.b16 %v419
    %v1444 = vunpack.c.l.b16 %v420
    %v1445 = vunpack.c.l.b16 %v421
    %v1446 = vunpack.c.l.b16 %v422
    %v1447 = vunpack.c.l.b16 %v423
    %v1448 = vunpack.c.l.b16 %v424
    %v1449 = vunpack.c.l.b16 %v425
    %v1450 = vunpack.c.l.b16 %v426
    %v1451 = vunpack.c.l.b16 %v427
    %v1452 = vunpack.c.l.b16 %v428
    %v1453 = vunpack.c.l.b16 %v429
    %v1454 = vunpack.c.l.b16 %v430
    %v1455 = vunpack.c.l.b16 %v431
    %v1456 = vunpack.c.l.b16 %v432
    %v1457 = vunpack.c.l.b16 %v433
    %v1458 = vunpack.c.l.b16 %v434
    %v1459 = vunpack.c.l.b16 %v435
    %v1460 = vunpack.c.l.b16 %v436
    %v1461 = vunpack.c.l.b16 %v437
    %v1462 = vunpack.c.l.b16 %v438
    %v1463 = vunpack.c.l.b16 %v439
    %v1464 = vunpack.c.l.b16 %v440
    %v1465 = vunpack.c.l.b16 %v441
    %v1466 = vunpack.c.l.b16 %v442
    %v1467 = vunpack.c.l.b16 %v443
    %v1468 = vunpack.c.l.b16 %v444
    %v1469 = vunpack.c.l.b16 %v445
    %v1470 = vunpack.c.l.b16 %v446
    %v1471 = vunpack.c.l.b16 %v447
    %v1472 = vunpack.c.l.b16 %v448
    %v1473 = vunpack.c.l.b16 %v449
    %v1474 = vunpack.c.l.b16 %v450
    %v1475 = vunpack.c.l.b16 %v451
    %v1476 = vunpack.c.l.b16 %v452
    %v1477 = vunpack.c.l.b16 %v453
    %v1478 = vunpack.c.l.b16 %v454
    %v1479 = vunpack.c.l.b16 %v455
    %v1480 = vunpack.c.l.b16 %v456
    %v1481 = vunpack.c.l.b16 %v457
    %v1482 = vunpack.c.l.b16 %v458
    %v1483 = vunpack.c.l.b16 %v459
    %v1484 = vunpack.c.l.b16 %v460
    %v1485 = vunpack.c.l.b16 %v461
    %v1486 = vunpack.c.l.b16 %v462
    %v1487 = vunpack.c.l.b16 %v463
    %v1488 = vunpack.c.l.b16 %v464
    %v1489 = vunpack.c.l.b16 %v465
    %v1490 = vunpack.c.l.b16 %v466
    %v1491 = vunpack.c.l.b16 %v467
    %v1492 = vunpack.c.l.b16 %v468
    %v1493 = vunpack.c.l.b16 %v469
    %v1494 = vunpack.c.l.b16 %v470
    %v1495 = vunpack.c.l.b16 %v471
    %v1496 = vunpack.c.l.b16 %v472
    %v1497 = vunpack.c.l.b16 %v473
    %v1498 = vunpack.c.l.b16 %v474
    %v1499 = vunpack.c.l.b16 %v475
    %v1500 = vunpack.c.l.b16 %v476
    %v1501 = vunpack.c.l.b16 %v477
    %v1502 = vunpack.c.l.b16 %v478
    %v1503 = vunpack.c.l.b16 %v479
    %v1504 = vunpack.c.l.b16 %v480
    %v1505 = vunpack.c.l.b16 %v481
    %v1506 = vunpack.c.l.b16 %v482
    %v1507 = vunpack.c.l.b16 %v483
    %v1508 = vunpack.c.l.b16 %v484
    %v1509 = vunpack.c.l.b16 %v485
    %v1510 = vunpack.c.l.b16 %v486
    %v1511 = vunpack.c.l.b16 %v487
    %v1512 = vunpack.c.l.b16 %v488
    %v1513 = vunpack.c.l.b16 %v489
    %v1514 = vunpack.c.l.b16 %v490
    %v1515 = vunpack.c.l.b16 %v491
    %v1516 = vunpack.c.l.b16 %v492
    %v1517 = vunpack.c.l.b16 %v493
    %v1518 = vunpack.c.l.b16 %v494
    %v1519 = vunpack.c.l.b16 %v495
    %v1520 = vunpack.c.l.b16 %v496
    %v1521 = vunpack.c.l.b16 %v497
    %v1522 = vunpack.c.l.b16 %v498
    %v1523 = vunpack.c.l.b16 %v499
    %v1524 = vunpack.c.l.b16 %v500
    %v1525 = vunpack.c.l.b16 %v501
    %v1526 = vunpack.c.l.b16 %v502
    %v1527 = vunpack.c.l.b16 %v503
    %v1528 = vunpack.c.l.b16 %v504
    %v1529 = vunpack.c.l.b16 %v505
    %v1530 = vunpack.c.l.b16 %v506
    %v1531 = vunpack.c.l.b16 %v507
    %v1532 = vunpack.c.l.b16 %v508
    %v1533 = vunpack.c.l.b16 %v509
    %v1534 = vunpack.c.l.b16 %v510
    %v1535 = vunpack.c.l.b16 %v511
    %v1536 = vunpack.c.l.b16 %v512
    %v1537 = vunpack.c.l.b16 %v513
    %v1538 = vunpack.c.l.b16 %v514
    %v1539 = vunpack.c.l.b16 %v515
    %v1540 = vunpack.c.l.b16 %v516
    %v1541 = vunpack.c.l.b16 %v517
    %v1542 = vunpack.c.l.b16 %v518
    %v1543 = vunpack.c.l.b16 %v519
    %v1544 = vunpack.c.l.b16 %v520
    %v1545 = vunpack.c.l.b16 %v521
    %v1546 = vunpack.c.l.b16 %v522
    %v1547 = vunpack.c.l.b16 %v523
    %v1548 = vunpack.c.l.b16 %v524
    %v1549 = vunpack.c.l.b16 %v525
    %v1550 = vunpack.c.l.b16 %v526
    %v1551 = vunpack.c.l.b16 %v527
    %v1552 = vunpack.c.l.b16 %v528
    %v1553 = vunpack.c.l.b16 %v529
    %v1554 = vunpack.c.l.b16 %v530
    %v1555 = vunpack.c.l.b16 %v531
    %v1556 = vunpack.c.l.b16 %v532
    %v1557 = vunpack.c.l.b16 %v533
    %v1558 = vunpack.c.l.b16 %v534
    %v1559 = vunpack.c.l.b16 %v535
    %v1560 = vunpack.c.l.b16 %v536
    %v1561 = vunpack.c.l.b16 %v537
    %v1562 = vunpack.c.l.b16 %v538
    %v1563 = vunpack.c.l.b16 %v539
    %v1564 = vunpack.c.l.b16 %v540
    %v1565 = vunpack.c.l.b16 %v541
    %v1566 = vunpack.c.l.b16 %v542
    %v1567 = vunpack.c.l.b16 %v543
    %v1568 = vunpack.c.l.b16 %v544
    %v1569 = vunpack.c.l.b16 %v545
    %v1570 = vunpack.c.l.b16 %v546
    %v1571 = vunpack.c.l.b16 %v547
    %v1572 = vunpack.c.l.b16 %v548
    %v1573 = vunpack.c.l.b16 %v549
    %v1574 = vunpack.c.l.b16 %v550
    %v1575 = vunpack.c.l.b16 %v551
    %v1576 = vunpack.c.l.b16 %v552
    %v1577 = vunpack.c.l.b16 %v553
    %v1578 = vunpack.c.l.b16 %v554
    %v1579 = vunpack.c.l.b16 %v555
    %v1580 = vunpack.c.l.b16 %v556
    %v1581 = vunpack.c.l.b16 %v557
    %v1582 = vunpack.c.l.b16 %v558
    %v1583 = vunpack.c.l.b16 %v559
    %v1584 = vunpack.c.l.b16 %v560
    %v1585 = vunpack.c.l.b16 %v561
    %v1586 = vunpack.c.l.b16 %v562
    %v1587 = vunpack.c.l.b16 %v563
    %v1588 = vunpack.c.l.b16 %v564
    %v1589 = vunpack.c.l.b16 %v565
    %v1590 = vunpack.c.l.b16 %v566
    %v1591 = vunpack.c.l.b16 %v567
    %v1592 = vunpack.c.l.b16 %v568
    %v1593 = vunpack.c.l.b16 %v569
    %v1594 = vunpack.c.l.b16 %v570
    %v1595 = vunpack.c.l.b16 %v571
    %v1596 = vunpack.c.l.b16 %v572
    %v1597 = vunpack.c.l.b16 %v573
    %v1598 = vunpack.c.l.b16 %v574
    %v1599 = vunpack.c.l.b16 %v575
    %v1600 = vunpack.c.l.b16 %v576
    %v1601 = vunpack.c.l.b16 %v577
    %v1602 = vunpack.c.l.b16 %v578
    %v1603 = vunpack.c.l.b16 %v579
    %v1604 = vunpack.c.l.b16 %v580
    %v1605 = vunpack.c.l.b16 %v581
    %v1606 = vunpack.c.l.b16 %v582
    %v1607 = vunpack.c.l.b16 %v583
    %v1608 = vunpack.c.l.b16 %v584
    %v1609 = vunpack.c.l.b16 %v585
    %v1610 = vunpack.c.l.b16 %v586
    %v1611 = vunpack.c.l.b16 %v587
    %v1612 = vunpack.c.l.b16 %v588
    %v1613 = vunpack.c.l.b16 %v589
    %v1614 = vunpack.c.l.b16 %v590
    %v1615 = vunpack.c.l.b16 %v591
    %v1616 = vunpack.c.l.b16 %v592
    %v1617 = vunpack.c.l.b16 %v593
    %v1618 = vunpack.c.l.b16 %v594
    %v1619 = vunpack.c.l.b16 %v595
    %v1620 = vunpack.c.l.b16 %v596
    %v1621 = vunpack.c.l.b16 %v597
    %v1622 = vunpack.c.l.b16 %v598
    %v1623 = vunpack.c.l.b16 %v599
    %v1624 = vunpack.c.l.b16 %v600
    %v1625 = vunpack.c.l.b16 %v601
    %v1626 = vunpack.c.l.b16 %v602
    %v1627 = vunpack.c.l.b16 %v603
    %v1628 = vunpack.c.l.b16 %v604
    %v1629 = vunpack.c.l.b16 %v605
    %v1630 = vunpack.c.l.b16 %v606
    %v1631 = vunpack.c.l.b16 %v607
    %v1632 = vunpack.c.l.b16 %v608
    %v1633 = vunpack.c.l.b16 %v609
    %v1634 = vunpack.c.l.b16 %v610
    %v1635 = vunpack.c.l.b16 %v611
    %v1636 = vunpack.c.l.b16 %v612
    %v1637 = vunpack.c.l.b16 %v613
    %v1638 = vunpack.c.l.b16 %v614
    %v1639 = vunpack.c.l.b16 %v615
    %v1640 = vunpack.c.l.b16 %v616
    %v1641 = vunpack.c.l.b16 %v617
    %v1642 = vunpack.c.l.b16 %v618
    %v1643 = vunpack.c.l.b16 %v619
    %v1644 = vunpack.c.l.b16 %v620
    %v1645 = vunpack.c.l.b16 %v621
    %v1646 = vunpack.c.l.b16 %v622
    %v1647 = vunpack.c.l.b16 %v623
    %v1648 = vunpack.c.l.b16 %v624
    %v1649 = vunpack.c.l.b16 %v625
    %v1650 = vunpack.c.l.b16 %v626
    %v1651 = vunpack.c.l.b16 %v627
    %v1652 = vunpack.c.l.b16 %v628
    %v1653 = vunpack.c.l.b16 %v629
    %v1654 = vunpack.c.l.b16 %v630
    %v1655 = vunpack.c.l.b16 %v631
    %v1656 = vunpack.c.l.b16 %v632
    %v1657 = vunpack.c.l.b16 %v633
    %v1658 = vunpack.c.l.b16 %v634
    %v1659 = vunpack.c.l.b16 %v635
    %v1660 = vunpack.c.l.b16 %v636
    %v1661 = vunpack.c.l.b16 %v637
    %v1662 = vunpack.c.l.b16 %v638
    %v1663 = vunpack.c.l.b16 %v639
    %v1664 = vunpack.c.l.b16 %v640
    %v1665 = vunpack.c.l.b16 %v641
    %v1666 = vunpack.c.l.b16 %v642
    %v1667 = vunpack.c.l.b16 %v643
    %v1668 = vunpack.c.l.b16 %v644
    %v1669 = vunpack.c.l.b16 %v645
    %v1670 = vunpack.c.l.b16 %v646
    %v1671 = vunpack.c.l.b16 %v647
    %v1672 = vunpack.c.l.b16 %v648
    %v1673 = vunpack.c.l.b16 %v649
    %v1674 = vunpack.c.l.b16 %v650
    %v1675 = vunpack.c.l.b16 %v651
    %v1676 = vunpack.c.l.b16 %v652
    %v1677 = vunpack.c.l.b16 %v653
    %v1678 = vunpack.c.l.b16 %v654
    %v1679 = vpack.c.b16 %v1168, %v1167
    %v1680 = vpack.c.b16 %v1170, %v1169
    %v1681 = vpack.c.b16 %v1172, %v1171
    %v1682 = vpack.c.b16 %v1174, %v1173
    %v1683 = vpack.c.b16 %v1176, %v1175
    %v1684 = vpack.c.b16 %v1178, %v1177
    %v1685 = vpack.c.b16 %v1180, %v1179
    %v1686 = vpack.c.b16 %v1182, %v1181
    %v1687 = vpack.c.b16 %v1184, %v1183
    %v1688 = vpack.c.b16 %v1186, %v1185
    %v1689 = vpack.c.b16 %v1188, %v1187
    %v1690 = vpack.c.b16 %v1190, %v1189
    %v1691 = vpack.c.b16 %v1192, %v1191
    %v1692 = vpack.c.b16 %v1194, %v1193
    %v1693 = vpack.c.b16 %v1196, %v1195
    %v1694 = vpack.c.b16 %v1198, %v1197
    %v1695 = vpack.c.b16 %v1200, %v1199
    %v1696 = vpack.c.b16 %v1202, %v1201
    %v1697 = vpack.c.b16 %v1204, %v1203
    %v1698 = vpack.c.b16 %v1206, %v1205
    %v1699 = vpack.c.b16 %v1208, %v1207
    %v1700 = vpack.c.b16 %v1210, %v1209
    %v1701 = vpack.c.b16 %v1212, %v1211
    %v1702 = vpack.c.b16 %v1214, %v1213
    %v1703 = vpack.c.b16 %v1216, %v1215
    %v1704 = vpack.c.b16 %v1218, %v1217
    %v1705 = vpack.c.b16 %v1220, %v1219
    %v1706 = vpack.c.b16 %v1222, %v1221
    %v1707 = vpack.c.b16 %v1224, %v1223
    %v1708 = vpack.c.b16 %v1226, %v1225
    %v1709 = vpack.c.b16 %v1228, %v1227
    %v1710 = vpack.c.b16 %v1230, %v1229
    %v1711 = vpack.c.b16 %v1232, %v1231
    %v1712 = vpack.c.b16 %v1234, %v1233
    %v1713 = vpack.c.b16 %v1236, %v1235
    %v1714 = vpack.c.b16 %v1238, %v1237
    %v1715 = vpack.c.b16 %v1240, %v1239
    %v1716 = vpack.c.b16 %v1242, %v1241
    %v1717 = vpack.c.b16 %v1244, %v1243
    %v1718 = vpack.c.b16 %v1246, %v1245
    %v1719 = vpack.c.b16 %v1248, %v1247
    %v1720 = vpack.c.b16 %v1250, %v1249
    %v1721 = vpack.c.b16 %v1252, %v1251
    %v1722 = vpack.c.b16 %v1254, %v1253
    %v1723 = vpack.c.b16 %v1256, %v1255
    %v1724 = vpack.c.b16 %v1258, %v1257
    %v1725 = vpack.c.b16 %v1260, %v1259
    %v1726 = vpack.c.b16 %v1262, %v1261
    %v1727 = vpack.c.b16 %v1264, %v1263
    %v1728 = vpack.c.b16 %v1266, %v1265
    %v1729 = vpack.c.b16 %v1268, %v1267
    %v1730 = vpack.c.b16 %v1270, %v1269
    %v1731 = vpack.c.b16 %v1272, %v1271
    %v1732 = vpack.c.b16 %v1274, %v1273
    %v1733 = vpack.c.b16 %v1276, %v1275
    %v1734 = vpack.c.b16 %v1278, %v1277
    %v1735 = vpack.c.b16 %v1280, %v1279
    %v1736 = vpack.c.b16 %v1282, %v1281
    %v1737 = vpack.c.b16 %v1284, %v1283
    %v1738 = vpack.c.b16 %v1286, %v1285
    %v1739 = vpack.c.b16 %v1288, %v1287
    %v1740 = vpack.c.b16 %v1290, %v1289
    %v1741 = vpack.c.b16 %v1292, %v1291
    %v1742 = vpack.c.b16 %v1294, %v1293
    %v1743 = vpack.c.b16 %v1296, %v1295
    %v1744 = vpack.c.b16 %v1298, %v1297
    %v1745 = vpack.c.b16 %v1300, %v1299
    %v1746 = vpack.c.b16 %v1302, %v1301
    %v1747 = vpack.c.b16 %v1304, %v1303
    %v1748 = vpack.c.b16 %v1306, %v1305
    %v1749 = vpack.c.b16 %v1308, %v1307
    %v1750 = vpack.c.b16 %v1310, %v1309
    %v1751 = vpack.c.b16 %v1312, %v1311
    %v1752 = vpack.c.b16 %v1314, %v1313
    %v1753 = vpack.c.b16 %v1316, %v1315
    %v1754 = vpack.c.b16 %v1318, %v1317
    %v1755 = vpack.c.b16 %v1320, %v1319
    %v1756 = vpack.c.b16 %v1322, %v1321
    %v1757 = vpack.c.b16 %v1324, %v1323
    %v1758 = vpack.c.b16 %v1326, %v1325
    %v1759 = vpack.c.b16 %v1328, %v1327
    %v1760 = vpack.c.b16 %v1330, %v1329
    %v1761 = vpack.c.b16 %v1332, %v1331
    %v1762 = vpack.c.b16 %v1334, %v1333
    %v1763 = vpack.c.b16 %v1336, %v1335
    %v1764 = vpack.c.b16 %v1338, %v1337
    %v1765 = vpack.c.b16 %v1340, %v1339
    %v1766 = vpack.c.b16 %v1342, %v1341
    %v1767 = vpack.c.b16 %v1344, %v1343
    %v1768 = vpack.c.b16 %v1346, %v1345
    %v1769 = vpack.c.b16 %v1348, %v1347
    %v1770 = vpack.c.b16 %v1350, %v1349
    %v1771 = vpack.c.b16 %v1352, %v1351
    %v1772 = vpack.c.b16 %v1354, %v1353
    %v1773 = vpack.c.b16 %v1356, %v1355
    %v1774 = vpack.c.b16 %v1358, %v1357
    %v1775 = vpack.c.b16 %v1360, %v1359
    %v1776 = vpack.c.b16 %v1362, %v1361
    %v1777 = vpack.c.b16 %v1364, %v1363
    %v1778 = vpack.c.b16 %v1366, %v1365
    %v1779 = vpack.c.b16 %v1368, %v1367
    %v1780 = vpack.c.b16 %v1370, %v1369
    %v1781 = vpack.c.b16 %v1372, %v1371
    %v1782 = vpack.c.b16 %v1374, %v1373
    %v1783 = vpack.c.b16 %v1376, %v1375
    %v1784 = vpack.c.b16 %v1378, %v1377
    %v1785 = vpack.c.b16 %v1380, %v1379
    %v1786 = vpack.c.b16 %v1382, %v1381
    %v1787 = vpack.c.b16 %v1384, %v1383
    %v1788 = vpack.c.b16 %v1386, %v1385
    %v1789 = vpack.c.b16 %v1388, %v1387
    %v1790 = vpack.c.b16 %v1390, %v1389
    %v1791 = vpack.c.b16 %v1392, %v1391
    %v1792 = vpack.c.b16 %v1394, %v1393
    %v1793 = vpack.c.b16 %v1396, %v1395
    %v1794 = vpack.c.b16 %v1398, %v1397
    %v1795 = vpack.c.b16 %v1400, %v1399
    %v1796 = vpack.c.b16 %v1402, %v1401
    %v1797 = vpack.c.b16 %v1404, %v1403
    %v1798 = vpack.c.b16 %v1406, %v1405
    %v1799 = vpack.c.b16 %v1408, %v1407
    %v1800 = vpack.c.b16 %v1410, %v1409
    %v1801 = vpack.c.b16 %v1412, %v1411
    %v1802 = vpack.c.b16 %v1414, %v1413
    %v1803 = vpack.c.b16 %v1416, %v1415
    %v1804 = vpack.c.b16 %v1418, %v1417
    %v1805 = vpack.c.b16 %v1420, %v1419
    %v1806 = vpack.c.b16 %v1422, %v1421
    %v1807 = vpack.c.b16 %v1424, %v1423
    %v1808 = vpack.c.b16 %v1426, %v1425
    %v1809 = vpack.c.b16 %v1428, %v1427
    %v1810 = vpack.c.b16 %v1430, %v1429
    %v1811 = vpack.c.b16 %v1432, %v1431
    %v1812 = vpack.c.b16 %v1434, %v1433
    %v1813 = vpack.c.b16 %v1436, %v1435
    %v1814 = vpack.c.b16 %v1438, %v1437
    %v1815 = vpack.c.b16 %v1440, %v1439
    %v1816 = vpack.c.b16 %v1442, %v1441
    %v1817 = vpack.c.b16 %v1444, %v1443
    %v1818 = vpack.c.b16 %v1446, %v1445
    %v1819 = vpack.c.b16 %v1448, %v1447
    %v1820 = vpack.c.b16 %v1450, %v1449
    %v1821 = vpack.c.b16 %v1452, %v1451
    %v1822 = vpack.c.b16 %v1454, %v1453
    %v1823 = vpack.c.b16 %v1456, %v1455
    %v1824 = vpack.c.b16 %v1458, %v1457
    %v1825 = vpack.c.b16 %v1460, %v1459
    %v1826 = vpack.c.b16 %v1462, %v1461
    %v1827 = vpack.c.b16 %v1464, %v1463
    %v1828 = vpack.c.b16 %v1466, %v1465
    %v1829 = vpack.c.b16 %v1468, %v1467
    %v1830 = vpack.c.b16 %v1470, %v1469
    %v1831 = vpack.c.b16 %v1472, %v1471
    %v1832 = vpack.c.b16 %v1474, %v1473
    %v1833 = vpack.c.b16 %v1476, %v1475
    %v1834 = vpack.c.b16 %v1478, %v1477
    %v1835 = vpack.c.b16 %v1480, %v1479
    %v1836 = vpack.c.b16 %v1482, %v1481
    %v1837 = vpack.c.b16 %v1484, %v1483
    %v1838 = vpack.c.b16 %v1486, %v1485
    %v1839 = vpack.c.b16 %v1488, %v1487
    %v1840 = vpack.c.b16 %v1490, %v1489
    %v1841 = vpack.c.b16 %v1492, %v1491
    %v1842 = vpack.c.b16 %v1494, %v1493
    %v1843 = vpack.c.b16 %v1496, %v1495
    %v1844 = vpack.c.b16 %v1498, %v1497
    %v1845 = vpack.c.b16 %v1500, %v1499
    %v1846 = vpack.c.b16 %v1502, %v1501
    %v1847 = vpack.c.b16 %v1504, %v1503
    %v1848 = vpack.c.b16 %v1506, %v1505
    %v1849 = vpack.c.b16 %v1508, %v1507
    %v1850 = vpack.c.b16 %v1510, %v1509
    %v1851 = vpack.c.b16 %v1512, %v1511
    %v1852 = vpack.c.b16 %v1514, %v1513
    %v1853 = vpack.c.b16 %v1516, %v1515
    %v1854 = vpack.c.b16 %v1518, %v1517
    %v1855 = vpack.c.b16 %v1520, %v1519
    %v1856 = vpack.c.b16 %v1522, %v1521
    %v1857 = vpack.c.b16 %v1524, %v1523
    %v1858 = vpack.c.b16 %v1526, %v1525
    %v1859 = vpack.c.b16 %v1528, %v1527
    %v1860 = vpack.c.b16 %v1530, %v1529
    %v1861 = vpack.c.b16 %v1532, %v1531
    %v1862 = vpack.c.b16 %v1534, %v1533
    %v1863 = vpack.c.b16 %v1536, %v1535
    %v1864 = vpack.c.b16 %v1538, %v1537
    %v1865 = vpack.c.b16 %v1540, %v1539
    %v1866 = vpack.c.b16 %v1542, %v1541
    %v1867 = vpack.c.b16 %v1544, %v1543
    %v1868 = vpack.c.b16 %v1546, %v1545
    %v1869 = vpack.c.b16 %v1548, %v1547
    %v1870 = vpack.c.b16 %v1550, %v1549
    %v1871 = vpack.c.b16 %v1552, %v1551
    %v1872 = vpack.c.b16 %v1554, %v1553
    %v1873 = vpack.c.b16 %v1556, %v1555
    %v1874 = vpack.c.b16 %v1558, %v1557
    %v1875 = vpack.c.b16 %v1560, %v1559
    %v1876 = vpack.c.b16 %v1562, %v1561
    %v1877 = vpack.c.b16 %v1564, %v1563
    %v1878 = vpack.c.b16 %v1566, %v1565
    %v1879 = vpack.c.b16 %v1568, %v1567
    %v1880 = vpack.c.b16 %v1570, %v1569
    %v1881 = vpack.c.b16 %v1572, %v1571
    %v1882 = vpack.c.b16 %v1574, %v1573
    %v1883 = vpack.c.b16 %v1576, %v1575
    %v1884 = vpack.c.b16 %v1578, %v1577
    %v1885 = vpack.c.b16 %v1580, %v1579
    %v1886 = vpack.c.b16 %v1582, %v1581
    %v1887 = vpack.c.b16 %v1584, %v1583
    %v1888 = vpack.c.b16 %v1586, %v1585
    %v1889 = vpack.c.b16 %v1588, %v1587
    %v1890 = vpack.c.b16 %v1590, %v1589
    %v1891 = vpack.c.b16 %v1592, %v1591
    %v1892 = vpack.c.b16 %v1594, %v1593
    %v1893 = vpack.c.b16 %v1596, %v1595
    %v1894 = vpack.c.b16 %v1598, %v1597
    %v1895 = vpack.c.b16 %v1600, %v1599
    %v1896 = vpack.c.b16 %v1602, %v1601
    %v1897 = vpack.c.b16 %v1604, %v1603
    %v1898 = vpack.c.b16 %v1606, %v1605
    %v1899 = vpack.c.b16 %v1608, %v1607
    %v1900 = vpack.c.b16 %v1610, %v1609
    %v1901 = vpack.c.b16 %v1612, %v1611
    %v1902 = vpack.c.b16 %v1614, %v1613
    %v1903 = vpack.c.b16 %v1616, %v1615
    %v1904 = vpack.c.b16 %v1618, %v1617
    %v1905 = vpack.c.b16 %v1620, %v1619
    %v1906 = vpack.c.b16 %v1622, %v1621
    %v1907 = vpack.c.b16 %v1624, %v1623
    %v1908 = vpack.c.b16 %v1626, %v1625
    %v1909 = vpack.c.b16 %v1628, %v1627
    %v1910 = vpack.c.b16 %v1630, %v1629
    %v1911 = vpack.c.b16 %v1632, %v1631
    %v1912 = vpack.c.b16 %v1634, %v1633
    %v1913 = vpack.c.b16 %v1636, %v1635
    %v1914 = vpack.c.b16 %v1638, %v1637
    %v1915 = vpack.c.b16 %v1640, %v1639
    %v1916 = vpack.c.b16 %v1642, %v1641
    %v1917 = vpack.c.b16 %v1644, %v1643
    %v1918 = vpack.c.b16 %v1646, %v1645
    %v1919 = vpack.c.b16 %v1648, %v1647
    %v1920 = vpack.c.b16 %v1650, %v1649
    %v1921 = vpack.c.b16 %v1652, %v1651
    %v1922 = vpack.c.b16 %v1654, %v1653
    %v1923 = vpack.c.b16 %v1656, %v1655
    %v1924 = vpack.c.b16 %v1658, %v1657
    %v1925 = vpack.c.b16 %v1660, %v1659
    %v1926 = vpack.c.b16 %v1662, %v1661
    %v1927 = vpack.c.b16 %v1664, %v1663
    %v1928 = vpack.c.b16 %v1666, %v1665
    %v1929 = vpack.c.b16 %v1668, %v1667
    %v1930 = vpack.c.b16 %v1670, %v1669
    %v1931 = vpack.c.b16 %v1672, %v1671
    %v1932 = vpack.c.b16 %v1674, %v1673
    %v1933 = vpack.c.b16 %v1676, %v1675
    %v1934 = vpack.c.b16 %v1678, %v1677
    %2191 = vmatpush.bf16.msra.mxu0 %v1686
    %2192 = vmatpush.bf16.msra.mxu0 %v1685
    %2193 = vmatpush.bf16.msra.mxu0 %v1684
    %2194 = vmatpush.bf16.msra.mxu0 %v1683
    %2195 = vmatpush.bf16.msra.mxu0 %v1682
    %2196 = vmatpush.bf16.msra.mxu0 %v1681
    %2197 = vmatpush.bf16.msra.mxu0 %v1680
    %2198 = vmatpush.bf16.msra.mxu0 %v1679
    %2199 = vmatmul.bf16.gmra.mxu0 %v111
    %v2200 = vpop.f32.mrf.mxu0
    %v2201 = vadd.f32 0.0, %v2200
    %v2202 = vpop.f32.mrf.mxu0
    %2203 = vdwg.mxu0
    %2204 = vmatpush.bf16.msra.mxu0 %v1694
    %2205 = vmatpush.bf16.msra.mxu0 %v1693
    %2206 = vmatpush.bf16.msra.mxu0 %v1692
    %2207 = vmatpush.bf16.msra.mxu0 %v1691
    %2208 = vmatpush.bf16.msra.mxu0 %v1690
    %2209 = vmatpush.bf16.msra.mxu0 %v1689
    %2210 = vmatpush.bf16.msra.mxu0 %v1688
    %2211 = vmatpush.bf16.msra.mxu0 %v1687
    %2212 = vmatmul.bf16.gmra.mxu0 %v112
    %v2213 = vpop.f32.mrf.mxu0
    %v2214 = vadd.f32 %v2201, %v2213
    %v2215 = vpop.f32.mrf.mxu0
    %2216 = vdwg.mxu0
    %2217 = vmatpush.bf16.msra.mxu0 %v1702
    %2218 = vmatpush.bf16.msra.mxu0 %v1701
    %2219 = vmatpush.bf16.msra.mxu0 %v1700
    %2220 = vmatpush.bf16.msra.mxu0 %v1699
    %2221 = vmatpush.bf16.msra.mxu0 %v1698
    %2222 = vmatpush.bf16.msra.mxu0 %v1697
    %2223 = vmatpush.bf16.msra.mxu0 %v1696
    %2224 = vmatpush.bf16.msra.mxu0 %v1695
    %2225 = vmatmul.bf16.gmra.mxu0 %v113
    %v2226 = vpop.f32.mrf.mxu0
    %v2227 = vadd.f32 %v2214, %v2226
    %v2228 = vpop.f32.mrf.mxu0
    %2229 = vdwg.mxu0
    %2230 = vmatpush.bf16.msra.mxu0 %v1710
    %2231 = vmatpush.bf16.msra.mxu0 %v1709
    %2232 = vmatpush.bf16.msra.mxu0 %v1708
    %2233 = vmatpush.bf16.msra.mxu0 %v1707
    %2234 = vmatpush.bf16.msra.mxu0 %v1706
    %2235 = vmatpush.bf16.msra.mxu0 %v1705
    %2236 = vmatpush.bf16.msra.mxu0 %v1704
    %2237 = vmatpush.bf16.msra.mxu0 %v1703
    %2238 = vmatmul.bf16.gmra.mxu0 %v114
    %v2239 = vpop.f32.mrf.mxu0
    %v2240 = vadd.f32 %v2227, %v2239
    %v2241 = vpop.f32.mrf.mxu0
    %2242 = vdwg.mxu0
    %2243 = vmatpush.bf16.msra.mxu0 %v1718
    %2244 = vmatpush.bf16.msra.mxu0 %v1717
    %2245 = vmatpush.bf16.msra.mxu0 %v1716
    %2246 = vmatpush.bf16.msra.mxu0 %v1715
    %2247 = vmatpush.bf16.msra.mxu0 %v1714
    %2248 = vmatpush.bf16.msra.mxu0 %v1713
    %2249 = vmatpush.bf16.msra.mxu0 %v1712
    %2250 = vmatpush.bf16.msra.mxu0 %v1711
    %2251 = vmatmul.bf16.gmra.mxu0 %v115
    %v2252 = vpop.f32.mrf.mxu0
    %v2253 = vadd.f32 %v2240, %v2252
    %v2254 = vpop.f32.mrf.mxu0
    %2255 = vdwg.mxu0
    %2256 = vmatpush.bf16.msra.mxu0 %v1726
    %2257 = vmatpush.bf16.msra.mxu0 %v1725
    %2258 = vmatpush.bf16.msra.mxu0 %v1724
    %2259 = vmatpush.bf16.msra.mxu0 %v1723
    %2260 = vmatpush.bf16.msra.mxu0 %v1722
    %2261 = vmatpush.bf16.msra.mxu0 %v1721
    %2262 = vmatpush.bf16.msra.mxu0 %v1720
    %2263 = vmatpush.bf16.msra.mxu0 %v1719
    %2264 = vmatmul.bf16.gmra.mxu0 %v116
    %v2265 = vpop.f32.mrf.mxu0
    %v2266 = vadd.f32 %v2253, %v2265
    %v2267 = vpop.f32.mrf.mxu0
    %2268 = vdwg.mxu0
    %2269 = vmatpush.bf16.msra.mxu0 %v1734
    %2270 = vmatpush.bf16.msra.mxu0 %v1733
    %2271 = vmatpush.bf16.msra.mxu0 %v1732
    %2272 = vmatpush.bf16.msra.mxu0 %v1731
    %2273 = vmatpush.bf16.msra.mxu0 %v1730
    %2274 = vmatpush.bf16.msra.mxu0 %v1729
    %2275 = vmatpush.bf16.msra.mxu0 %v1728
    %2276 = vmatpush.bf16.msra.mxu0 %v1727
    %2277 = vmatmul.bf16.gmra.mxu0 %v117
    %v2278 = vpop.f32.mrf.mxu0
    %v2279 = vadd.f32 %v2266, %v2278
    %v2280 = vpop.f32.mrf.mxu0
    %2281 = vdwg.mxu0
    %2282 = vmatpush.bf16.msra.mxu0 %v1742
    %2283 = vmatpush.bf16.msra.mxu0 %v1741
    %2284 = vmatpush.bf16.msra.mxu0 %v1740
    %2285 = vmatpush.bf16.msra.mxu0 %v1739
    %2286 = vmatpush.bf16.msra.mxu0 %v1738
    %2287 = vmatpush.bf16.msra.mxu0 %v1737
    %2288 = vmatpush.bf16.msra.mxu0 %v1736
    %2289 = vmatpush.bf16.msra.mxu0 %v1735
    %2290 = vmatmul.bf16.gmra.mxu0 %v118
    %v2291 = vpop.f32.mrf.mxu0
    %v2292 = vadd.f32 %v2279, %v2291
    %v2293 = vpop.f32.mrf.mxu0
    %2294 = vdwg.mxu0
    %2295 = vmatpush.bf16.msra.mxu0 %v1750
    %2296 = vmatpush.bf16.msra.mxu0 %v1749
    %2297 = vmatpush.bf16.msra.mxu0 %v1748
    %2298 = vmatpush.bf16.msra.mxu0 %v1747
    %2299 = vmatpush.bf16.msra.mxu0 %v1746
    %2300 = vmatpush.bf16.msra.mxu0 %v1745
    %2301 = vmatpush.bf16.msra.mxu0 %v1744
    %2302 = vmatpush.bf16.msra.mxu0 %v1743
    %2303 = vmatmul.bf16.gmra.mxu0 %v119
    %v2304 = vpop.f32.mrf.mxu0
    %v2305 = vadd.f32 %v2292, %v2304
    %v2306 = vpop.f32.mrf.mxu0
    %2307 = vdwg.mxu0
    %2308 = vmatpush.bf16.msra.mxu0 %v1758
    %2309 = vmatpush.bf16.msra.mxu0 %v1757
    %2310 = vmatpush.bf16.msra.mxu0 %v1756
    %2311 = vmatpush.bf16.msra.mxu0 %v1755
    %2312 = vmatpush.bf16.msra.mxu0 %v1754
    %2313 = vmatpush.bf16.msra.mxu0 %v1753
    %2314 = vmatpush.bf16.msra.mxu0 %v1752
    %2315 = vmatpush.bf16.msra.mxu0 %v1751
    %2316 = vmatmul.bf16.gmra.mxu0 %v120
    %v2317 = vpop.f32.mrf.mxu0
    %v2318 = vadd.f32 %v2305, %v2317
    %v2319 = vpop.f32.mrf.mxu0
    %2320 = vdwg.mxu0
    %2321 = vmatpush.bf16.msra.mxu0 %v1766
    %2322 = vmatpush.bf16.msra.mxu0 %v1765
    %2323 = vmatpush.bf16.msra.mxu0 %v1764
    %2324 = vmatpush.bf16.msra.mxu0 %v1763
    %2325 = vmatpush.bf16.msra.mxu0 %v1762
    %2326 = vmatpush.bf16.msra.mxu0 %v1761
    %2327 = vmatpush.bf16.msra.mxu0 %v1760
    %2328 = vmatpush.bf16.msra.mxu0 %v1759
    %2329 = vmatmul.bf16.gmra.mxu0 %v121
    %v2330 = vpop.f32.mrf.mxu0
    %v2331 = vadd.f32 %v2318, %v2330
    %v2332 = vpop.f32.mrf.mxu0
    %2333 = vdwg.mxu0
    %2334 = vmatpush.bf16.msra.mxu0 %v1774
    %2335 = vmatpush.bf16.msra.mxu0 %v1773
    %2336 = vmatpush.bf16.msra.mxu0 %v1772
    %2337 = vmatpush.bf16.msra.mxu0 %v1771
    %2338 = vmatpush.bf16.msra.mxu0 %v1770
    %2339 = vmatpush.bf16.msra.mxu0 %v1769
    %2340 = vmatpush.bf16.msra.mxu0 %v1768
    %2341 = vmatpush.bf16.msra.mxu0 %v1767
    %2342 = vmatmul.bf16.gmra.mxu0 %v122
    %v2343 = vpop.f32.mrf.mxu0
    %v2344 = vadd.f32 %v2331, %v2343
    %v2345 = vpop.f32.mrf.mxu0
    %2346 = vdwg.mxu0
    %2347 = vmatpush.bf16.msra.mxu0 %v1782
    %2348 = vmatpush.bf16.msra.mxu0 %v1781
    %2349 = vmatpush.bf16.msra.mxu0 %v1780
    %2350 = vmatpush.bf16.msra.mxu0 %v1779
    %2351 = vmatpush.bf16.msra.mxu0 %v1778
    %2352 = vmatpush.bf16.msra.mxu0 %v1777
    %2353 = vmatpush.bf16.msra.mxu0 %v1776
    %2354 = vmatpush.bf16.msra.mxu0 %v1775
    %2355 = vmatmul.bf16.gmra.mxu0 %v123
    %v2356 = vpop.f32.mrf.mxu0
    %v2357 = vadd.f32 %v2344, %v2356
    %v2358 = vpop.f32.mrf.mxu0
    %2359 = vdwg.mxu0
    %2360 = vmatpush.bf16.msra.mxu0 %v1790
    %2361 = vmatpush.bf16.msra.mxu0 %v1789
    %2362 = vmatpush.bf16.msra.mxu0 %v1788
    %2363 = vmatpush.bf16.msra.mxu0 %v1787
    %2364 = vmatpush.bf16.msra.mxu0 %v1786
    %2365 = vmatpush.bf16.msra.mxu0 %v1785
    %2366 = vmatpush.bf16.msra.mxu0 %v1784
    %2367 = vmatpush.bf16.msra.mxu0 %v1783
    %2368 = vmatmul.bf16.gmra.mxu0 %v124
    %v2369 = vpop.f32.mrf.mxu0
    %v2370 = vadd.f32 %v2357, %v2369
    %v2371 = vpop.f32.mrf.mxu0
    %2372 = vdwg.mxu0
    %2373 = vmatpush.bf16.msra.mxu0 %v1798
    %2374 = vmatpush.bf16.msra.mxu0 %v1797
    %2375 = vmatpush.bf16.msra.mxu0 %v1796
    %2376 = vmatpush.bf16.msra.mxu0 %v1795
    %2377 = vmatpush.bf16.msra.mxu0 %v1794
    %2378 = vmatpush.bf16.msra.mxu0 %v1793
    %2379 = vmatpush.bf16.msra.mxu0 %v1792
    %2380 = vmatpush.bf16.msra.mxu0 %v1791
    %2381 = vmatmul.bf16.gmra.mxu0 %v125
    %v2382 = vpop.f32.mrf.mxu0
    %v2383 = vadd.f32 %v2370, %v2382
    %v2384 = vpop.f32.mrf.mxu0
    %2385 = vdwg.mxu0
    %2386 = vmatpush.bf16.msra.mxu0 %v1806
    %2387 = vmatpush.bf16.msra.mxu0 %v1805
    %2388 = vmatpush.bf16.msra.mxu0 %v1804
    %2389 = vmatpush.bf16.msra.mxu0 %v1803
    %2390 = vmatpush.bf16.msra.mxu0 %v1802
    %2391 = vmatpush.bf16.msra.mxu0 %v1801
    %2392 = vmatpush.bf16.msra.mxu0 %v1800
    %2393 = vmatpush.bf16.msra.mxu0 %v1799
    %2394 = vmatmul.bf16.gmra.mxu0 %v126
    %v2395 = vpop.f32.mrf.mxu0
    %v2396 = vadd.f32 %v2383, %v2395
    %v2397 = vpop.f32.mrf.mxu0
    %2398 = vdwg.mxu0
    %2399 = vmatpush.bf16.msra.mxu0 %v1814
    %2400 = vmatpush.bf16.msra.mxu0 %v1813
    %2401 = vmatpush.bf16.msra.mxu0 %v1812
    %2402 = vmatpush.bf16.msra.mxu0 %v1811
    %2403 = vmatpush.bf16.msra.mxu0 %v1810
    %2404 = vmatpush.bf16.msra.mxu0 %v1809
    %2405 = vmatpush.bf16.msra.mxu0 %v1808
    %2406 = vmatpush.bf16.msra.mxu0 %v1807
    %2407 = vmatmul.bf16.gmra.mxu0 %v127
    %v2408 = vpop.f32.mrf.mxu0
    %v2409 = vadd.f32 %v2396, %v2408
    %v2410 = vpop.f32.mrf.mxu0
    %2411 = vdwg.mxu0
    %2412 = vmatpush.bf16.msra.mxu0 %v1822
    %2413 = vmatpush.bf16.msra.mxu0 %v1821
    %2414 = vmatpush.bf16.msra.mxu0 %v1820
    %2415 = vmatpush.bf16.msra.mxu0 %v1819
    %2416 = vmatpush.bf16.msra.mxu0 %v1818
    %2417 = vmatpush.bf16.msra.mxu0 %v1817
    %2418 = vmatpush.bf16.msra.mxu0 %v1816
    %2419 = vmatpush.bf16.msra.mxu0 %v1815
    %2420 = vmatmul.bf16.gmra.mxu0 %v128
    %v2421 = vpop.f32.mrf.mxu0
    %v2422 = vadd.f32 %v2409, %v2421
    %v2423 = vpop.f32.mrf.mxu0
    %2424 = vdwg.mxu0
    %2425 = vmatpush.bf16.msra.mxu0 %v1830
    %2426 = vmatpush.bf16.msra.mxu0 %v1829
    %2427 = vmatpush.bf16.msra.mxu0 %v1828
    %2428 = vmatpush.bf16.msra.mxu0 %v1827
    %2429 = vmatpush.bf16.msra.mxu0 %v1826
    %2430 = vmatpush.bf16.msra.mxu0 %v1825
    %2431 = vmatpush.bf16.msra.mxu0 %v1824
    %2432 = vmatpush.bf16.msra.mxu0 %v1823
    %2433 = vmatmul.bf16.gmra.mxu0 %v129
    %v2434 = vpop.f32.mrf.mxu0
    %v2435 = vadd.f32 %v2422, %v2434
    %v2436 = vpop.f32.mrf.mxu0
    %2437 = vdwg.mxu0
    %2438 = vmatpush.bf16.msra.mxu0 %v1838
    %2439 = vmatpush.bf16.msra.mxu0 %v1837
    %2440 = vmatpush.bf16.msra.mxu0 %v1836
    %2441 = vmatpush.bf16.msra.mxu0 %v1835
    %2442 = vmatpush.bf16.msra.mxu0 %v1834
    %2443 = vmatpush.bf16.msra.mxu0 %v1833
    %2444 = vmatpush.bf16.msra.mxu0 %v1832
    %2445 = vmatpush.bf16.msra.mxu0 %v1831
    %2446 = vmatmul.bf16.gmra.mxu0 %v130
    %v2447 = vpop.f32.mrf.mxu0
    %v2448 = vadd.f32 %v2435, %v2447
    %v2449 = vpop.f32.mrf.mxu0
    %2450 = vdwg.mxu0
    %2451 = vmatpush.bf16.msra.mxu0 %v1846
    %2452 = vmatpush.bf16.msra.mxu0 %v1845
    %2453 = vmatpush.bf16.msra.mxu0 %v1844
    %2454 = vmatpush.bf16.msra.mxu0 %v1843
    %2455 = vmatpush.bf16.msra.mxu0 %v1842
    %2456 = vmatpush.bf16.msra.mxu0 %v1841
    %2457 = vmatpush.bf16.msra.mxu0 %v1840
    %2458 = vmatpush.bf16.msra.mxu0 %v1839
    %2459 = vmatmul.bf16.gmra.mxu0 %v131
    %v2460 = vpop.f32.mrf.mxu0
    %v2461 = vadd.f32 %v2448, %v2460
    %v2462 = vpop.f32.mrf.mxu0
    %2463 = vdwg.mxu0
    %2464 = vmatpush.bf16.msra.mxu0 %v1854
    %2465 = vmatpush.bf16.msra.mxu0 %v1853
    %2466 = vmatpush.bf16.msra.mxu0 %v1852
    %2467 = vmatpush.bf16.msra.mxu0 %v1851
    %2468 = vmatpush.bf16.msra.mxu0 %v1850
    %2469 = vmatpush.bf16.msra.mxu0 %v1849
    %2470 = vmatpush.bf16.msra.mxu0 %v1848
    %2471 = vmatpush.bf16.msra.mxu0 %v1847
    %2472 = vmatmul.bf16.gmra.mxu0 %v132
    %v2473 = vpop.f32.mrf.mxu0
    %v2474 = vadd.f32 %v2461, %v2473
    %v2475 = vpop.f32.mrf.mxu0
    %2476 = vdwg.mxu0
    %2477 = vmatpush.bf16.msra.mxu0 %v1862
    %2478 = vmatpush.bf16.msra.mxu0 %v1861
    %2479 = vmatpush.bf16.msra.mxu0 %v1860
    %2480 = vmatpush.bf16.msra.mxu0 %v1859
    %2481 = vmatpush.bf16.msra.mxu0 %v1858
    %2482 = vmatpush.bf16.msra.mxu0 %v1857
    %2483 = vmatpush.bf16.msra.mxu0 %v1856
    %2484 = vmatpush.bf16.msra.mxu0 %v1855
    %2485 = vmatmul.bf16.gmra.mxu0 %v133
    %v2486 = vpop.f32.mrf.mxu0
    %v2487 = vadd.f32 %v2474, %v2486
    %v2488 = vpop.f32.mrf.mxu0
    %2489 = vdwg.mxu0
    %2490 = vmatpush.bf16.msra.mxu0 %v1870
    %2491 = vmatpush.bf16.msra.mxu0 %v1869
    %2492 = vmatpush.bf16.msra.mxu0 %v1868
    %2493 = vmatpush.bf16.msra.mxu0 %v1867
    %2494 = vmatpush.bf16.msra.mxu0 %v1866
    %2495 = vmatpush.bf16.msra.mxu0 %v1865
    %2496 = vmatpush.bf16.msra.mxu0 %v1864
    %2497 = vmatpush.bf16.msra.mxu0 %v1863
    %2498 = vmatmul.bf16.gmra.mxu0 %v134
    %v2499 = vpop.f32.mrf.mxu0
    %v2500 = vadd.f32 %v2487, %v2499
    %v2501 = vpop.f32.mrf.mxu0
    %2502 = vdwg.mxu0
    %2503 = vmatpush.bf16.msra.mxu0 %v1878
    %2504 = vmatpush.bf16.msra.mxu0 %v1877
    %2505 = vmatpush.bf16.msra.mxu0 %v1876
    %2506 = vmatpush.bf16.msra.mxu0 %v1875
    %2507 = vmatpush.bf16.msra.mxu0 %v1874
    %2508 = vmatpush.bf16.msra.mxu0 %v1873
    %2509 = vmatpush.bf16.msra.mxu0 %v1872
    %2510 = vmatpush.bf16.msra.mxu0 %v1871
    %2511 = vmatmul.bf16.gmra.mxu0 %v135
    %v2512 = vpop.f32.mrf.mxu0
    %v2513 = vadd.f32 %v2500, %v2512
    %v2514 = vpop.f32.mrf.mxu0
    %2515 = vdwg.mxu0
    %2516 = vmatpush.bf16.msra.mxu0 %v1886
    %2517 = vmatpush.bf16.msra.mxu0 %v1885
    %2518 = vmatpush.bf16.msra.mxu0 %v1884
    %2519 = vmatpush.bf16.msra.mxu0 %v1883
    %2520 = vmatpush.bf16.msra.mxu0 %v1882
    %2521 = vmatpush.bf16.msra.mxu0 %v1881
    %2522 = vmatpush.bf16.msra.mxu0 %v1880
    %2523 = vmatpush.bf16.msra.mxu0 %v1879
    %2524 = vmatmul.bf16.gmra.mxu0 %v136
    %v2525 = vpop.f32.mrf.mxu0
    %v2526 = vadd.f32 %v2513, %v2525
    %v2527 = vpop.f32.mrf.mxu0
    %2528 = vdwg.mxu0
    %2529 = vmatpush.bf16.msra.mxu0 %v1894
    %2530 = vmatpush.bf16.msra.mxu0 %v1893
    %2531 = vmatpush.bf16.msra.mxu0 %v1892
    %2532 = vmatpush.bf16.msra.mxu0 %v1891
    %2533 = vmatpush.bf16.msra.mxu0 %v1890
    %2534 = vmatpush.bf16.msra.mxu0 %v1889
    %2535 = vmatpush.bf16.msra.mxu0 %v1888
    %2536 = vmatpush.bf16.msra.mxu0 %v1887
    %2537 = vmatmul.bf16.gmra.mxu0 %v137
    %v2538 = vpop.f32.mrf.mxu0
    %v2539 = vadd.f32 %v2526, %v2538
    %v2540 = vpop.f32.mrf.mxu0
    %2541 = vdwg.mxu0
    %2542 = vmatpush.bf16.msra.mxu0 %v1902
    %2543 = vmatpush.bf16.msra.mxu0 %v1901
    %2544 = vmatpush.bf16.msra.mxu0 %v1900
    %2545 = vmatpush.bf16.msra.mxu0 %v1899
    %2546 = vmatpush.bf16.msra.mxu0 %v1898
    %2547 = vmatpush.bf16.msra.mxu0 %v1897
    %2548 = vmatpush.bf16.msra.mxu0 %v1896
    %2549 = vmatpush.bf16.msra.mxu0 %v1895
    %2550 = vmatmul.bf16.gmra.mxu0 %v138
    %v2551 = vpop.f32.mrf.mxu0
    %v2552 = vadd.f32 %v2539, %v2551
    %v2553 = vpop.f32.mrf.mxu0
    %2554 = vdwg.mxu0
    %2555 = vmatpush.bf16.msra.mxu0 %v1910
    %2556 = vmatpush.bf16.msra.mxu0 %v1909
    %2557 = vmatpush.bf16.msra.mxu0 %v1908
    %2558 = vmatpush.bf16.msra.mxu0 %v1907
    %2559 = vmatpush.bf16.msra.mxu0 %v1906
    %2560 = vmatpush.bf16.msra.mxu0 %v1905
    %2561 = vmatpush.bf16.msra.mxu0 %v1904
    %2562 = vmatpush.bf16.msra.mxu0 %v1903
    %2563 = vmatmul.bf16.gmra.mxu0 %v139
    %v2564 = vpop.f32.mrf.mxu0
    %v2565 = vadd.f32 %v2552, %v2564
    %v2566 = vpop.f32.mrf.mxu0
    %2567 = vdwg.mxu0
    %2568 = vmatpush.bf16.msra.mxu0 %v1918
    %2569 = vmatpush.bf16.msra.mxu0 %v1917
    %2570 = vmatpush.bf16.msra.mxu0 %v1916
    %2571 = vmatpush.bf16.msra.mxu0 %v1915
    %2572 = vmatpush.bf16.msra.mxu0 %v1914
    %2573 = vmatpush.bf16.msra.mxu0 %v1913
    %2574 = vmatpush.bf16.msra.mxu0 %v1912
    %2575 = vmatpush.bf16.msra.mxu0 %v1911
    %2576 = vmatmul.bf16.gmra.mxu0 %v140
    %v2577 = vpop.f32.mrf.mxu0
    %v2578 = vadd.f32 %v2565, %v2577
    %v2579 = vpop.f32.mrf.mxu0
    %2580 = vdwg.mxu0
    %2581 = vmatpush.bf16.msra.mxu0 %v1926
    %2582 = vmatpush.bf16.msra.mxu0 %v1925
    %2583 = vmatpush.bf16.msra.mxu0 %v1924
    %2584 = vmatpush.bf16.msra.mxu0 %v1923
    %2585 = vmatpush.bf16.msra.mxu0 %v1922
    %2586 = vmatpush.bf16.msra.mxu0 %v1921
    %2587 = vmatpush.bf16.msra.mxu0 %v1920
    %2588 = vmatpush.bf16.msra.mxu0 %v1919
    %2589 = vmatmul.bf16.gmra.mxu0 %v141
    %v2590 = vpop.f32.mrf.mxu0
    %v2591 = vadd.f32 %v2578, %v2590
    %v2592 = vpop.f32.mrf.mxu0
    %2593 = vdwg.mxu0
    %2594 = vmatpush.bf16.msra.mxu0 %v1934
    %2595 = vmatpush.bf16.msra.mxu0 %v1933
    %2596 = vmatpush.bf16.msra.mxu0 %v1932
    %2597 = vmatpush.bf16.msra.mxu0 %v1931
    %2598 = vmatpush.bf16.msra.mxu0 %v1930
    %2599 = vmatpush.bf16.msra.mxu0 %v1929
    %2600 = vmatpush.bf16.msra.mxu0 %v1928
    %2601 = vmatpush.bf16.msra.mxu0 %v1927
    %2602 = vmatmul.bf16.gmra.mxu0 %v142
    %v2603 = vpop.f32.mrf.mxu0
    %v2604 = vadd.f32 %v2591, %v2603
    %v2605 = vpop.f32.mrf.mxu0
    %2606 = vdwg.mxu0
    %v2607 = vld [vmem:[%s2] sm:$0x1]
    %v2609 = vperm.slane %v2607, 0
    %v2611 = vmul.f32 %v2604, %v2609
    %v2612 = vld [vmem:[%s3] sm:$0x1]
    %v2614 = vperm.slane %v2612, 0
    %v2616 = vadd.f32 %v2611, %v2614
    %s2617 = sld [smem:[#allocation2]]
    %vm2618 = vcmp.ge.f32.partialorder %v2616, 0.0
    %v2619 = vstv %s2617
    %v2620 = vmul.f32 %v2619, %v2616
    %v2621 = vsel %vm2618, %v2616, %v2620
    %v2622 = vpack.c.bf16 %v2621, %v2621
    %2623 = vst [vmem:[#allocation3] sm:$0x1] %v2622
    // Predicated region
    $region22: #{forward.1} parent=1 // pred_check
      _
    $region23: #{forward.1} parent=1 // pred_check_branch
      %2625 = sbr.rel (0) target = $region25
    $region24: #{forward.1} parent=1 // pred_region
      %2627 = vsyncadd [#allocation4], 0
      %s2629 = sshll.u32 [#allocation3], 4
      %s2630 = int_to_ptr.vmem [resolvable:$true] %s2629
      %s2631 = sshll.u32 %s5, 4
      %s2632 = int_to_ptr.hbm [resolvable:$true] %s2631
      %2634 = dma.vmem_to_hbm [thread:$0]  %s2630, 16, %s2632, [#allocation4]
    $region25: #{forward.1} parent=1 // pred_fallthru
      _
    // Predicated region
    $region26: #{forward.1} parent=1 // pred_check
      _
    $region27: #{forward.1} parent=1 // pred_check_branch
      %2636 = sbr.rel (0) target = $region29
    $region28: #{forward.1} parent=1 // pred_region
      %2638 = dma.done [#allocation4], 16
    $region29: #{forward.1} parent=1 // pred_fallthru
      _
    %2639 = vsyncpa [#allocation4], 1

</llo_original>
